<compile_context>
chip_gen: v7x
topology: tpu7x:2x2x1
jax: 0.10.0
libtpu: 0.0.40
codegen_flags: <defaults>
</compile_context>

<pallas_src>
import jax
import jax.numpy as jnp
from jax.experimental import pallas as pl
from jax.experimental.pallas import tpu as pltpu

NEUTRAL_RATING = 3.5
EXPONENT = 1.5  # kernel uses the exact closed form x * sqrt(|x|)
# TODO(synk): a general runtime `exponent` would need an exp/log pow in-kernel.


# --------------------------------------------------------------------------
# Kernel
# --------------------------------------------------------------------------
def support_set_kernel(emb_ref, ids_ref, ratings_ref, out_ref):
    """One batch tile.

    emb_ref     : (N, Dp)   item table (constant block index -> resident in
                            VMEM across all grid steps)
    ids_ref     : (tb, K)   int32 movie ids for this batch tile
    ratings_ref : (tb, K)   f32 ratings (lane-dense, no trailing 1)
    out_ref     : (tb, Dp)  f32
    """
    ids = ids_ref[...]                                   # (tb, K) int32
    ratings = ratings_ref[...].astype(jnp.float32)       # (tb, K)

    # Sharpened weights: sign(x) * |x|^1.5 == x * sqrt(|x|)  (exact at 0).
    w0 = ratings - NEUTRAL_RATING
    w = w0 * jnp.sqrt(jnp.abs(w0))                       # (tb, K)
    norm = jnp.maximum(jnp.sum(jnp.abs(w), axis=1, keepdims=True), 1.0)
    w = w / norm                                         # (tb, K)

    tb, kk = ids.shape
    n = emb_ref.shape[0]

    # Weighted one-hot selection matrix S (tb, N) built on the VPU.
    # Duplicate ids simply accumulate their weights (same as the gather sum).
    iota = jax.lax.broadcasted_iota(jnp.int32, (tb, n), 1)
    s = jnp.zeros((tb, n), dtype=jnp.float32)
    for k in range(kk):                                  # K is small & static
        s = s + jnp.where(ids[:, k:k + 1] == iota, w[:, k:k + 1], 0.0)

    # Fused gather + weighted-reduce as a single MXU matmul, f32 accumulate.
    table = emb_ref[...]                                 # (N, Dp)
    out_ref[...] = jnp.dot(s.astype(table.dtype), table,
                           preferred_element_type=jnp.float32)


# --------------------------------------------------------------------------
# Wrapper helpers
# --------------------------------------------------------------------------
def _round_up(x, m):
    return ((x + m - 1) // m) * m


def _vmem_capacity_bytes():
    try:
        return int(pltpu.get_tpu_info().vmem_capacity_bytes)
    except Exception:
        return 64 << 20  # conservative default (v7x per-TensorCore VMEM)


def _pick_batch_tile(b8, k, n, dp):
    # Dominant per-step VMEM users: the in-kernel S matrix (tb, N) f32 and the
    # double-buffered output block (tb, Dp) f32; ids/ratings are tiny.
    per_row = 4 * n + 8 * dp + 8 * k
    cap = max(8, ((8 << 20) // max(per_row, 1)) // 8 * 8)
    tb = min(1024, cap, b8)
    if b8 >= 16:
        # Keep >= 2 grid steps so ("parallel",) can feed both v7x TensorCores.
        tb = min(tb, max(8, (b8 // 2) // 8 * 8))
    return max(8, (tb // 8) * 8)


# --------------------------------------------------------------------------
# Pallas path
# --------------------------------------------------------------------------
def _encode_pallas(item_emb, movie_ids, ratings, *, tb=None):
    num_items, d = item_emb.shape
    batch, k = movie_ids.shape
    vmem_cap = _vmem_capacity_bytes()

    # Lane-dense output: pad the embedding dim up to 128 if it is smaller.
    dp = d if d >= 128 else 128
    table = item_emb  # keep native dtype (bf16 tables stay bf16)
    if dp != d:
        table = jnp.pad(item_emb, ((0, 0), (0, dp - d)))

    b8 = _round_up(batch, 8)
    if tb is None:
        tb = _pick_batch_tile(b8, k, num_items, dp)
    tb = max(8, _round_up(tb, 8))
    bp = _round_up(batch, tb)

    # ids clamped (jnp.take 'clip' semantics); PyTorch nn.Embedding would raise
    # on out-of-range ids -- documented behavioral difference.
    ids = jnp.clip(movie_ids.astype(jnp.int32), 0, num_items - 1)
    r = ratings.astype(jnp.float32)
    if bp != batch:
        pad = bp - batch
        ids = jnp.pad(ids, ((0, pad), (0, 0)))
        # Neutral rating -> zero weight -> padded rows compute to exactly 0
        # (and are sliced off below; they never mix with valid rows).
        r = jnp.pad(r, ((0, pad), (0, 0)), constant_values=NEUTRAL_RATING)

    itemsize = jnp.dtype(table.dtype).itemsize
    table_bytes = num_items * dp * itemsize
    step_bytes = 2 * (2 * tb * k * 4 + tb * dp * 4)   # ids+ratings+out, x2 bufs
    s_bytes = 2 * tb * num_items * 4                  # in-kernel one-hot / S temps
    want = 2 * table_bytes + step_bytes + s_bytes + (4 << 20)
    vmem_limit = int(min(vmem_cap, want)) if want > (16 << 20) else None

    grid = (bp // tb,)

    def build(single_buffer_table):
        if single_buffer_table:
            # Constant block index: fetched once; single buffer halves the
            # table's VMEM footprint (critical on v7x's 64 MiB VMEM).
            table_spec = pl.BlockSpec((num_items, dp), lambda i: (0, 0),
                                      pipeline_mode=pl.Buffered(1))
        else:
            table_spec = pl.BlockSpec((num_items, dp), lambda i: (0, 0))
        return pl.pallas_call(
            support_set_kernel,
            out_shape=jax.ShapeDtypeStruct((bp, dp), jnp.float32),
            grid=grid,
            in_specs=[table_spec,
                      pl.BlockSpec((tb, k), lambda i: (i, 0)),
                      pl.BlockSpec((tb, k), lambda i: (i, 0))],
            out_specs=pl.BlockSpec((tb, dp), lambda i: (i, 0)),
            compiler_params=pltpu.CompilerParams(
                dimension_semantics=("parallel",),
                vmem_limit_bytes=vmem_limit),
        )

    try:
        out = build(True)(table, ids, r)
    except Exception:
        # pl.Buffered(1) not accepted by this build -> default double buffering
        # (vmem_limit above already accounts for 2x table).
        out = build(False)(table, ids, r)
    return out[:batch, :d]


# --------------------------------------------------------------------------
# XLA fallback & public entry point
# --------------------------------------------------------------------------
def _encode_jax(item_emb, movie_ids, ratings):
    e = jnp.take(item_emb, movie_ids, axis=0).astype(jnp.float32)
    w0 = (ratings.astype(jnp.float32) - NEUTRAL_RATING)[..., None]
    w = w0 * jnp.sqrt(jnp.abs(w0))
    norm = jnp.maximum(jnp.sum(jnp.abs(w), axis=1, keepdims=True), 1.0)
    return jnp.sum((w / norm) * e, axis=1)


def support_set_encoder(item_emb, movie_ids, ratings, *, tb=None, prefer_pallas=None):
    """Forward pass of SupportSetEncoder (exponent fixed at 1.5)."""
    batch, k = movie_ids.shape
    num_items, d = item_emb.shape
    if k == 0:
        return jnp.zeros((batch, d), dtype=jnp.float32)

    vmem_cap = _vmem_capacity_bytes()
    dp = d if d >= 128 else 128
    table_bytes = num_items * dp * jnp.dtype(item_emb.dtype).itemsize
    # Whole table must stay VMEM-resident, with headroom for the per-step
    # blocks / in-kernel temporaries (and for the double-buffered fallback).
    table_fits_vmem = table_bytes <= (vmem_cap * 2) // 5

    if prefer_pallas is None:
        # Tiny problems: plain XLA fusion beats kernel-launch + grid overhead.
        prefer_pallas = batch * k * d >= (1 << 20)

    if prefer_pallas and table_fits_vmem:
        return _encode_pallas(item_emb, movie_ids, ratings, tb=tb)
    # TODO(synk): tables too large for VMEM need a scalar-prefetch +
    # make_async_copy row-gather kernel; fused XLA fallback for now.
    return _encode_jax(item_emb, movie_ids, ratings)


# --------------------------------------------------------------------------
# Reference (mirrors the PyTorch formula) & self-test
# --------------------------------------------------------------------------
def _reference(item_emb, movie_ids, ratings):
    e = jnp.take(item_emb, movie_ids, axis=0).astype(jnp.float32)
    w0 = (ratings.astype(jnp.float32) - NEUTRAL_RATING)[..., None]
    w = jnp.sign(w0) * jnp.abs(w0) ** EXPONENT
    norm = jnp.maximum(jnp.sum(jnp.abs(w), axis=1, keepdims=True), 1.0)
    return jnp.sum((w / norm) * e, axis=1)


if __name__ == "__main__":
    key = jax.random.PRNGKey(0)
    k_emb, k_ids, k_rat = jax.random.split(key, 3)

    num_items, d = 128, 32
    batch, k = 64, 8

    # Deterministic synthetic parameters (nn.Embedding weight).
    item_emb = jax.random.normal(k_emb, (num_items, d), dtype=jnp.float32)
    movie_ids = jax.random.randint(k_ids, (batch, k), 0, num_items, dtype=jnp.int32)
    # Ratings in [0.5, 5.0] (half-star scale).
    ratings = jnp.round(
        jax.random.uniform(k_rat, (batch, k), minval=0.5, maxval=5.0) * 2.0) / 2.0

    # Force the Pallas path; default tiling gives a 2-step ("parallel") grid.
    out = support_set_encoder(item_emb, movie_ids, ratings, prefer_pallas=True)
    out = jax.block_until_ready(out)

    ref = _reference(item_emb, movie_ids, ratings)
    assert out.shape == (batch, d), out.shape
    max_err = float(jnp.max(jnp.abs(out - ref)))
    # MXU f32 contraction may use multi-pass bf16 splitting, so the tolerance
    # is looser than a pure-VPU implementation would need; structural bugs
    # (wrong rows / normalization / padding leakage) are O(0.1)+.
    assert max_err < 1e-2, f"max abs err {max_err}"
    print("KERNEL_OK")
</pallas_src>

<mosaic_0001>
module attributes {stable_mosaic.version = 11 : i64} {
  func.func @support_set_kernel(%arg0: i32, %arg1: memref<128x128xf32, #tpu.memory_space<vmem>>, %arg2: memref<32x8xi32, #tpu.memory_space<vmem>>, %arg3: memref<32x8xf32, #tpu.memory_space<vmem>>, %arg4: memref<32x128xf32, #tpu.memory_space<vmem>>) attributes {dimension_semantics = [#tpu.dimension_semantics<parallel>], iteration_bounds = array<i64: 2>, scalar_prefetch = 0 : i64, scratch_operands = 0 : i64, tpu.core_type = #tpu.core_type<tc>, window_params = [{pipeline_mode = #tpu.pipeline_mode<synchronous>, transform_indices = @transform_0, window_bounds = array<i64: 128, 128>}, {transform_indices = @transform_1, window_bounds = array<i64: 32, 8>}, {transform_indices = @transform_2, window_bounds = array<i64: 32, 8>}, {transform_indices = @transform_3, window_bounds = array<i64: 32, 128>}]} {
    %c0 = arith.constant 0 : index
    %c0_0 = arith.constant 0 : index
    %0 = vector.load %arg2[%c0, %c0_0] : memref<32x8xi32, #tpu.memory_space<vmem>>, vector<32x8xi32>
    %c0_1 = arith.constant 0 : index
    %c0_2 = arith.constant 0 : index
    %1 = vector.load %arg3[%c0_1, %c0_2] : memref<32x8xf32, #tpu.memory_space<vmem>>, vector<32x8xf32>
    %cst = arith.constant 3.500000e+00 : f32
    %2 = vector.broadcast %cst : f32 to vector<32x8xf32>
    %3 = arith.subf %1, %2 : vector<32x8xf32>
    %4 = math.absf %3 : vector<32x8xf32>
    %5 = math.sqrt %4 : vector<32x8xf32>
    %6 = arith.mulf %3, %5 : vector<32x8xf32>
    %7 = math.absf %6 : vector<32x8xf32>
    %cst_3 = arith.constant dense<0.000000e+00> : vector<32xf32>
    %8 = vector.multi_reduction <add>, %7, %cst_3 [1] : vector<32x8xf32> to vector<32xf32>
    %9 = vector.shape_cast %8 : vector<32xf32> to vector<32x1xf32>
    %cst_4 = arith.constant 1.000000e+00 : f32
    %10 = vector.broadcast %cst_4 : f32 to vector<32x1xf32>
    %11 = arith.maximumf %9, %10 : vector<32x1xf32>
    %12 = vector.broadcast %11 : vector<32x1xf32> to vector<32x8xf32>
    %13 = arith.divf %6, %12 : vector<32x8xf32>
    %14 = tpu.iota {dimensions = array<i32: 1>} : vector<32x128xi32>
    %cst_5 = arith.constant 0.000000e+00 : f32
    %15 = vector.broadcast %cst_5 : f32 to vector<32x128xf32>
    %16 = vector.extract_strided_slice %0 {offsets = [0, 0], sizes = [32, 1], strides = [1, 1]} : vector<32x8xi32> to vector<32x1xi32>
    %17 = vector.broadcast %16 : vector<32x1xi32> to vector<32x128xi32>
    %18 = arith.cmpi eq, %17, %14 : vector<32x128xi32>
    %19 = vector.extract_strided_slice %13 {offsets = [0, 0], sizes = [32, 1], strides = [1, 1]} : vector<32x8xf32> to vector<32x1xf32>
    %cst_6 = arith.constant 0.000000e+00 : f32
    %20 = vector.shape_cast %19 : vector<32x1xf32> to vector<32x1xf32>
    %21 = vector.broadcast %20 : vector<32x1xf32> to vector<32x128xf32>
    %22 = vector.broadcast %cst_6 : f32 to vector<32x128xf32>
    %23 = arith.select %18, %21, %22 : vector<32x128xi1>, vector<32x128xf32>
    %24 = arith.addf %15, %23 : vector<32x128xf32>
    %25 = vector.extract_strided_slice %0 {offsets = [0, 1], sizes = [32, 1], strides = [1, 1]} : vector<32x8xi32> to vector<32x1xi32>
    %26 = vector.broadcast %25 : vector<32x1xi32> to vector<32x128xi32>
    %27 = arith.cmpi eq, %26, %14 : vector<32x128xi32>
    %28 = vector.extract_strided_slice %13 {offsets = [0, 1], sizes = [32, 1], strides = [1, 1]} : vector<32x8xf32> to vector<32x1xf32>
    %cst_7 = arith.constant 0.000000e+00 : f32
    %29 = vector.shape_cast %28 : vector<32x1xf32> to vector<32x1xf32>
    %30 = vector.broadcast %29 : vector<32x1xf32> to vector<32x128xf32>
    %31 = vector.broadcast %cst_7 : f32 to vector<32x128xf32>
    %32 = arith.select %27, %30, %31 : vector<32x128xi1>, vector<32x128xf32>
    %33 = arith.addf %24, %32 : vector<32x128xf32>
    %34 = vector.extract_strided_slice %0 {offsets = [0, 2], sizes = [32, 1], strides = [1, 1]} : vector<32x8xi32> to vector<32x1xi32>
    %35 = vector.broadcast %34 : vector<32x1xi32> to vector<32x128xi32>
    %36 = arith.cmpi eq, %35, %14 : vector<32x128xi32>
    %37 = vector.extract_strided_slice %13 {offsets = [0, 2], sizes = [32, 1], strides = [1, 1]} : vector<32x8xf32> to vector<32x1xf32>
    %cst_8 = arith.constant 0.000000e+00 : f32
    %38 = vector.shape_cast %37 : vector<32x1xf32> to vector<32x1xf32>
    %39 = vector.broadcast %38 : vector<32x1xf32> to vector<32x128xf32>
    %40 = vector.broadcast %cst_8 : f32 to vector<32x128xf32>
    %41 = arith.select %36, %39, %40 : vector<32x128xi1>, vector<32x128xf32>
    %42 = arith.addf %33, %41 : vector<32x128xf32>
    %43 = vector.extract_strided_slice %0 {offsets = [0, 3], sizes = [32, 1], strides = [1, 1]} : vector<32x8xi32> to vector<32x1xi32>
    %44 = vector.broadcast %43 : vector<32x1xi32> to vector<32x128xi32>
    %45 = arith.cmpi eq, %44, %14 : vector<32x128xi32>
    %46 = vector.extract_strided_slice %13 {offsets = [0, 3], sizes = [32, 1], strides = [1, 1]} : vector<32x8xf32> to vector<32x1xf32>
    %cst_9 = arith.constant 0.000000e+00 : f32
    %47 = vector.shape_cast %46 : vector<32x1xf32> to vector<32x1xf32>
    %48 = vector.broadcast %47 : vector<32x1xf32> to vector<32x128xf32>
    %49 = vector.broadcast %cst_9 : f32 to vector<32x128xf32>
    %50 = arith.select %45, %48, %49 : vector<32x128xi1>, vector<32x128xf32>
    %51 = arith.addf %42, %50 : vector<32x128xf32>
    %52 = vector.extract_strided_slice %0 {offsets = [0, 4], sizes = [32, 1], strides = [1, 1]} : vector<32x8xi32> to vector<32x1xi32>
    %53 = vector.broadcast %52 : vector<32x1xi32> to vector<32x128xi32>
    %54 = arith.cmpi eq, %53, %14 : vector<32x128xi32>
    %55 = vector.extract_strided_slice %13 {offsets = [0, 4], sizes = [32, 1], strides = [1, 1]} : vector<32x8xf32> to vector<32x1xf32>
    %cst_10 = arith.constant 0.000000e+00 : f32
    %56 = vector.shape_cast %55 : vector<32x1xf32> to vector<32x1xf32>
    %57 = vector.broadcast %56 : vector<32x1xf32> to vector<32x128xf32>
    %58 = vector.broadcast %cst_10 : f32 to vector<32x128xf32>
    %59 = arith.select %54, %57, %58 : vector<32x128xi1>, vector<32x128xf32>
    %60 = arith.addf %51, %59 : vector<32x128xf32>
    %61 = vector.extract_strided_slice %0 {offsets = [0, 5], sizes = [32, 1], strides = [1, 1]} : vector<32x8xi32> to vector<32x1xi32>
    %62 = vector.broadcast %61 : vector<32x1xi32> to vector<32x128xi32>
    %63 = arith.cmpi eq, %62, %14 : vector<32x128xi32>
    %64 = vector.extract_strided_slice %13 {offsets = [0, 5], sizes = [32, 1], strides = [1, 1]} : vector<32x8xf32> to vector<32x1xf32>
    %cst_11 = arith.constant 0.000000e+00 : f32
    %65 = vector.shape_cast %64 : vector<32x1xf32> to vector<32x1xf32>
    %66 = vector.broadcast %65 : vector<32x1xf32> to vector<32x128xf32>
    %67 = vector.broadcast %cst_11 : f32 to vector<32x128xf32>
    %68 = arith.select %63, %66, %67 : vector<32x128xi1>, vector<32x128xf32>
    %69 = arith.addf %60, %68 : vector<32x128xf32>
    %70 = vector.extract_strided_slice %0 {offsets = [0, 6], sizes = [32, 1], strides = [1, 1]} : vector<32x8xi32> to vector<32x1xi32>
    %71 = vector.broadcast %70 : vector<32x1xi32> to vector<32x128xi32>
    %72 = arith.cmpi eq, %71, %14 : vector<32x128xi32>
    %73 = vector.extract_strided_slice %13 {offsets = [0, 6], sizes = [32, 1], strides = [1, 1]} : vector<32x8xf32> to vector<32x1xf32>
    %cst_12 = arith.constant 0.000000e+00 : f32
    %74 = vector.shape_cast %73 : vector<32x1xf32> to vector<32x1xf32>
    %75 = vector.broadcast %74 : vector<32x1xf32> to vector<32x128xf32>
    %76 = vector.broadcast %cst_12 : f32 to vector<32x128xf32>
    %77 = arith.select %72, %75, %76 : vector<32x128xi1>, vector<32x128xf32>
    %78 = arith.addf %69, %77 : vector<32x128xf32>
    %79 = vector.extract_strided_slice %0 {offsets = [0, 7], sizes = [32, 1], strides = [1, 1]} : vector<32x8xi32> to vector<32x1xi32>
    %80 = vector.broadcast %79 : vector<32x1xi32> to vector<32x128xi32>
    %81 = arith.cmpi eq, %80, %14 : vector<32x128xi32>
    %82 = vector.extract_strided_slice %13 {offsets = [0, 7], sizes = [32, 1], strides = [1, 1]} : vector<32x8xf32> to vector<32x1xf32>
    %cst_13 = arith.constant 0.000000e+00 : f32
    %83 = vector.shape_cast %82 : vector<32x1xf32> to vector<32x1xf32>
    %84 = vector.broadcast %83 : vector<32x1xf32> to vector<32x128xf32>
    %85 = vector.broadcast %cst_13 : f32 to vector<32x128xf32>
    %86 = arith.select %81, %84, %85 : vector<32x128xi1>, vector<32x128xf32>
    %87 = arith.addf %78, %86 : vector<32x128xf32>
    %c0_14 = arith.constant 0 : index
    %c0_15 = arith.constant 0 : index
    %88 = vector.load %arg1[%c0_14, %c0_15] : memref<128x128xf32, #tpu.memory_space<vmem>>, vector<128x128xf32>
    %cst_16 = arith.constant dense<0.000000e+00> : vector<32x128xf32>
    %89 = tpu.matmul %87, %88, %cst_16 {dimension_numbers = #tpu.dot_dimension_numbers<[1], [0], [0], [1], [0, 0, 1, 1], [], []>} : vector<32x128xf32>, vector<128x128xf32>, vector<32x128xf32> -> vector<32x128xf32>
    %c0_17 = arith.constant 0 : index
    %c0_18 = arith.constant 0 : index
    %90 = vector.load %arg4[%c0_17, %c0_18] : memref<32x128xf32, #tpu.memory_space<vmem>>, vector<32x128xf32>
    tpu.vector_store %arg4[%c0_17, %c0_18], %89 {strides = array<i32>} : memref<32x128xf32, #tpu.memory_space<vmem>>, vector<32x128xf32>,
    return
  }
  func.func @transform_0(%arg0: i32) -> (i32, i32) {
    %c0_i32 = arith.constant 0 : i32
    %c0_i32_0 = arith.constant 0 : i32
    %c0_i32_1 = arith.constant 0 : i32
    return %c0_i32, %c0_i32_0 : i32, i32
  }
  func.func @transform_1(%arg0: i32) -> (i32, i32) {
    %c0_i32 = arith.constant 0 : i32
    %c0_i32_0 = arith.constant 0 : i32
    return %arg0, %c0_i32 : i32, i32
  }
  func.func @transform_2(%arg0: i32) -> (i32, i32) {
    %c0_i32 = arith.constant 0 : i32
    %c0_i32_0 = arith.constant 0 : i32
    return %arg0, %c0_i32 : i32, i32
  }
  func.func @transform_3(%arg0: i32) -> (i32, i32) {
    %c0_i32 = arith.constant 0 : i32
    %c0_i32_0 = arith.constant 0 : i32
    return %arg0, %c0_i32 : i32, i32
  }
}

module attributes {stable_mosaic.version = 11 : i64} {
  func.func @support_set_kernel(%arg0: i32, %arg1: memref<128x128xf32, #tpu.memory_space<vmem>>, %arg2: memref<32x8xi32, #tpu.memory_space<vmem>>, %arg3: memref<32x8xf32, #tpu.memory_space<vmem>>, %arg4: memref<32x128xf32, #tpu.memory_space<vmem>>) attributes {dimension_semantics = [#tpu.dimension_semantics<parallel>], iteration_bounds = array<i64: 2>, scalar_prefetch = 0 : i64, scratch_operands = 0 : i64, tpu.core_type = #tpu.core_type<tc>, window_params = [{pipeline_mode = #tpu.pipeline_mode<synchronous>, transform_indices = @transform_0, window_bounds = array<i64: 128, 128>}, {transform_indices = @transform_1, window_bounds = array<i64: 32, 8>}, {transform_indices = @transform_2, window_bounds = array<i64: 32, 8>}, {transform_indices = @transform_3, window_bounds = array<i64: 32, 128>}]} {
    %c0 = arith.constant 0 : index
    %c0_0 = arith.constant 0 : index
    %0 = vector.load %arg2[%c0, %c0_0] : memref<32x8xi32, #tpu.memory_space<vmem>>, vector<32x8xi32>
    %c0_1 = arith.constant 0 : index
    %c0_2 = arith.constant 0 : index
    %1 = vector.load %arg3[%c0_1, %c0_2] : memref<32x8xf32, #tpu.memory_space<vmem>>, vector<32x8xf32>
    %cst = arith.constant 3.500000e+00 : f32
    %2 = vector.broadcast %cst : f32 to vector<32x8xf32>
    %3 = arith.subf %1, %2 : vector<32x8xf32>
    %4 = math.absf %3 : vector<32x8xf32>
    %5 = math.sqrt %4 : vector<32x8xf32>
    %6 = arith.mulf %3, %5 : vector<32x8xf32>
    %7 = math.absf %6 : vector<32x8xf32>
    %cst_3 = arith.constant dense<0.000000e+00> : vector<32xf32>
    %8 = vector.multi_reduction <add>, %7, %cst_3 [1] : vector<32x8xf32> to vector<32xf32>
    %9 = vector.shape_cast %8 : vector<32xf32> to vector<32x1xf32>
    %cst_4 = arith.constant 1.000000e+00 : f32
    %10 = vector.broadcast %cst_4 : f32 to vector<32x1xf32>
    %11 = arith.maximumf %9, %10 : vector<32x1xf32>
    %12 = vector.broadcast %11 : vector<32x1xf32> to vector<32x8xf32>
    %13 = arith.divf %6, %12 : vector<32x8xf32>
    %14 = tpu.iota {dimensions = array<i32: 1>} : vector<32x128xi32>
    %cst_5 = arith.constant 0.000000e+00 : f32
    %15 = vector.broadcast %cst_5 : f32 to vector<32x128xf32>
    %16 = vector.extract_strided_slice %0 {offsets = [0, 0], sizes = [32, 1], strides = [1, 1]} : vector<32x8xi32> to vector<32x1xi32>
    %17 = vector.broadcast %16 : vector<32x1xi32> to vector<32x128xi32>
    %18 = arith.cmpi eq, %17, %14 : vector<32x128xi32>
    %19 = vector.extract_strided_slice %13 {offsets = [0, 0], sizes = [32, 1], strides = [1, 1]} : vector<32x8xf32> to vector<32x1xf32>
    %cst_6 = arith.constant 0.000000e+00 : f32
    %20 = vector.shape_cast %19 : vector<32x1xf32> to vector<32x1xf32>
    %21 = vector.broadcast %20 : vector<32x1xf32> to vector<32x128xf32>
    %22 = vector.broadcast %cst_6 : f32 to vector<32x128xf32>
    %23 = arith.select %18, %21, %22 : vector<32x128xi1>, vector<32x128xf32>
    %24 = arith.addf %15, %23 : vector<32x128xf32>
    %25 = vector.extract_strided_slice %0 {offsets = [0, 1], sizes = [32, 1], strides = [1, 1]} : vector<32x8xi32> to vector<32x1xi32>
    %26 = vector.broadcast %25 : vector<32x1xi32> to vector<32x128xi32>
    %27 = arith.cmpi eq, %26, %14 : vector<32x128xi32>
    %28 = vector.extract_strided_slice %13 {offsets = [0, 1], sizes = [32, 1], strides = [1, 1]} : vector<32x8xf32> to vector<32x1xf32>
    %cst_7 = arith.constant 0.000000e+00 : f32
    %29 = vector.shape_cast %28 : vector<32x1xf32> to vector<32x1xf32>
    %30 = vector.broadcast %29 : vector<32x1xf32> to vector<32x128xf32>
    %31 = vector.broadcast %cst_7 : f32 to vector<32x128xf32>
    %32 = arith.select %27, %30, %31 : vector<32x128xi1>, vector<32x128xf32>
    %33 = arith.addf %24, %32 : vector<32x128xf32>
    %34 = vector.extract_strided_slice %0 {offsets = [0, 2], sizes = [32, 1], strides = [1, 1]} : vector<32x8xi32> to vector<32x1xi32>
    %35 = vector.broadcast %34 : vector<32x1xi32> to vector<32x128xi32>
    %36 = arith.cmpi eq, %35, %14 : vector<32x128xi32>
    %37 = vector.extract_strided_slice %13 {offsets = [0, 2], sizes = [32, 1], strides = [1, 1]} : vector<32x8xf32> to vector<32x1xf32>
    %cst_8 = arith.constant 0.000000e+00 : f32
    %38 = vector.shape_cast %37 : vector<32x1xf32> to vector<32x1xf32>
    %39 = vector.broadcast %38 : vector<32x1xf32> to vector<32x128xf32>
    %40 = vector.broadcast %cst_8 : f32 to vector<32x128xf32>
    %41 = arith.select %36, %39, %40 : vector<32x128xi1>, vector<32x128xf32>
    %42 = arith.addf %33, %41 : vector<32x128xf32>
    %43 = vector.extract_strided_slice %0 {offsets = [0, 3], sizes = [32, 1], strides = [1, 1]} : vector<32x8xi32> to vector<32x1xi32>
    %44 = vector.broadcast %43 : vector<32x1xi32> to vector<32x128xi32>
    %45 = arith.cmpi eq, %44, %14 : vector<32x128xi32>
    %46 = vector.extract_strided_slice %13 {offsets = [0, 3], sizes = [32, 1], strides = [1, 1]} : vector<32x8xf32> to vector<32x1xf32>
    %cst_9 = arith.constant 0.000000e+00 : f32
    %47 = vector.shape_cast %46 : vector<32x1xf32> to vector<32x1xf32>
    %48 = vector.broadcast %47 : vector<32x1xf32> to vector<32x128xf32>
    %49 = vector.broadcast %cst_9 : f32 to vector<32x128xf32>
    %50 = arith.select %45, %48, %49 : vector<32x128xi1>, vector<32x128xf32>
    %51 = arith.addf %42, %50 : vector<32x128xf32>
    %52 = vector.extract_strided_slice %0 {offsets = [0, 4], sizes = [32, 1], strides = [1, 1]} : vector<32x8xi32> to vector<32x1xi32>
    %53 = vector.broadcast %52 : vector<32x1xi32> to vector<32x128xi32>
    %54 = arith.cmpi eq, %53, %14 : vector<32x128xi32>
    %55 = vector.extract_strided_slice %13 {offsets = [0, 4], sizes = [32, 1], strides = [1, 1]} : vector<32x8xf32> to vector<32x1xf32>
    %cst_10 = arith.constant 0.000000e+00 : f32
    %56 = vector.shape_cast %55 : vector<32x1xf32> to vector<32x1xf32>
    %57 = vector.broadcast %56 : vector<32x1xf32> to vector<32x128xf32>
    %58 = vector.broadcast %cst_10 : f32 to vector<32x128xf32>
    %59 = arith.select %54, %57, %58 : vector<32x128xi1>, vector<32x128xf32>
    %60 = arith.addf %51, %59 : vector<32x128xf32>
    %61 = vector.extract_strided_slice %0 {offsets = [0, 5], sizes = [32, 1], strides = [1, 1]} : vector<32x8xi32> to vector<32x1xi32>
    %62 = vector.broadcast %61 : vector<32x1xi32> to vector<32x128xi32>
    %63 = arith.cmpi eq, %62, %14 : vector<32x128xi32>
    %64 = vector.extract_strided_slice %13 {offsets = [0, 5], sizes = [32, 1], strides = [1, 1]} : vector<32x8xf32> to vector<32x1xf32>
    %cst_11 = arith.constant 0.000000e+00 : f32
    %65 = vector.shape_cast %64 : vector<32x1xf32> to vector<32x1xf32>
    %66 = vector.broadcast %65 : vector<32x1xf32> to vector<32x128xf32>
    %67 = vector.broadcast %cst_11 : f32 to vector<32x128xf32>
    %68 = arith.select %63, %66, %67 : vector<32x128xi1>, vector<32x128xf32>
    %69 = arith.addf %60, %68 : vector<32x128xf32>
    %70 = vector.extract_strided_slice %0 {offsets = [0, 6], sizes = [32, 1], strides = [1, 1]} : vector<32x8xi32> to vector<32x1xi32>
    %71 = vector.broadcast %70 : vector<32x1xi32> to vector<32x128xi32>
    %72 = arith.cmpi eq, %71, %14 : vector<32x128xi32>
    %73 = vector.extract_strided_slice %13 {offsets = [0, 6], sizes = [32, 1], strides = [1, 1]} : vector<32x8xf32> to vector<32x1xf32>
    %cst_12 = arith.constant 0.000000e+00 : f32
    %74 = vector.shape_cast %73 : vector<32x1xf32> to vector<32x1xf32>
    %75 = vector.broadcast %74 : vector<32x1xf32> to vector<32x128xf32>
    %76 = vector.broadcast %cst_12 : f32 to vector<32x128xf32>
    %77 = arith.select %72, %75, %76 : vector<32x128xi1>, vector<32x128xf32>
    %78 = arith.addf %69, %77 : vector<32x128xf32>
    %79 = vector.extract_strided_slice %0 {offsets = [0, 7], sizes = [32, 1], strides = [1, 1]} : vector<32x8xi32> to vector<32x1xi32>
    %80 = vector.broadcast %79 : vector<32x1xi32> to vector<32x128xi32>
    %81 = arith.cmpi eq, %80, %14 : vector<32x128xi32>
    %82 = vector.extract_strided_slice %13 {offsets = [0, 7], sizes = [32, 1], strides = [1, 1]} : vector<32x8xf32> to vector<32x1xf32>
    %cst_13 = arith.constant 0.000000e+00 : f32
    %83 = vector.shape_cast %82 : vector<32x1xf32> to vector<32x1xf32>
    %84 = vector.broadcast %83 : vector<32x1xf32> to vector<32x128xf32>
    %85 = vector.broadcast %cst_13 : f32 to vector<32x128xf32>
    %86 = arith.select %81, %84, %85 : vector<32x128xi1>, vector<32x128xf32>
    %87 = arith.addf %78, %86 : vector<32x128xf32>
    %c0_14 = arith.constant 0 : index
    %c0_15 = arith.constant 0 : index
    %88 = vector.load %arg1[%c0_14, %c0_15] : memref<128x128xf32, #tpu.memory_space<vmem>>, vector<128x128xf32>
    %cst_16 = arith.constant dense<0.000000e+00> : vector<32x128xf32>
    %89 = tpu.matmul %87, %88, %cst_16 {dimension_numbers = #tpu.dot_dimension_numbers<[1], [0], [0], [1], [0, 0, 1, 1], [], []>} : vector<32x128xf32>, vector<128x128xf32>, vector<32x128xf32> -> vector<32x128xf32>
    %c0_17 = arith.constant 0 : index
    %c0_18 = arith.constant 0 : index
    %90 = vector.load %arg4[%c0_17, %c0_18] : memref<32x128xf32, #tpu.memory_space<vmem>>, vector<32x128xf32>
    tpu.vector_store %arg4[%c0_17, %c0_18], %89 {strides = array<i32>} : memref<32x128xf32, #tpu.memory_space<vmem>>, vector<32x128xf32>,
    return
  }
  func.func @transform_0(%arg0: i32) -> (i32, i32) {
    %c0_i32 = arith.constant 0 : i32
    %c0_i32_0 = arith.constant 0 : i32
    %c0_i32_1 = arith.constant 0 : i32
    return %c0_i32, %c0_i32_0 : i32, i32
  }
  func.func @transform_1(%arg0: i32) -> (i32, i32) {
    %c0_i32 = arith.constant 0 : i32
    %c0_i32_0 = arith.constant 0 : i32
    return %arg0, %c0_i32 : i32, i32
  }
  func.func @transform_2(%arg0: i32) -> (i32, i32) {
    %c0_i32 = arith.constant 0 : i32
    %c0_i32_0 = arith.constant 0 : i32
    return %arg0, %c0_i32 : i32, i32
  }
  func.func @transform_3(%arg0: i32) -> (i32, i32) {
    %c0_i32 = arith.constant 0 : i32
    %c0_i32_0 = arith.constant 0 : i32
    return %arg0, %c0_i32 : i32, i32
  }
}

</mosaic_0001>

<llo_original>
// kernel: tpu_custom_call.1
$region0: #{tpu_custom_call.1}
  #allocation0 [shape = 'u32[]', space=smem, size = 0x4, offset = 0x4, fixed_abs, tag = 'smem constant byte address 0x4 - core index']
  #allocation1 [shape = 'u32[144,128]{1,0:T(1,128)}', space=vmem, size = 0x12000, scoped, tag = 'internal scratch']
  %s0 = inlined_call_operand.vmem [shape: f32[128,128], index: 0, kind: input, shape index: {}]
  %s1 = inlined_call_operand.vmem [shape: s32[64,8], index: 1, kind: input, shape index: {}]
  %s2 = inlined_call_operand.vmem [shape: f32[64,8], index: 2, kind: input, shape index: {}]
  %s3 = inlined_call_operand.hbm [shape: f32[64,128], index: 3, kind: output, shape index: {}]
  %s4 = sld [smem:[#allocation0]]
  $region45: #{tpu_custom_call.1} parent=0
    _
  %s6 = ssub.s32 1, %s4
  %s7 = scalar_select 0, %s6, %s4
  $region1: #{tpu_custom_call.1} parent=0
    #allocation2 [shape = 'u8[32768]{0}', space=vmem, size = 0x8000, scoped, tag = 'output window, operand 0']
    #allocation3 [shape = 's32[2]{0}', space=sflag, size = 0x8, scoped, tag = 'scoped memory for tpu_custom_call.1']
    %8 = vsyncpa [#allocation3], 0
    %s9 = scalar_lea.sflag [#allocation3], 1
    %10 = vsyncpa %s9, 0
    loop: start=0, step=1, limit=4
    $region2: #{tpu_custom_call.1} parent=1 // loop_pre_header
      _
    $region3: #{tpu_custom_call.1} parent=1 // loop_header
      %s12 = sphi 0, %s16
      %p13 = scmp.ge.s32.totalorder %s12, 4
      %s20 = sphi 0, %s20
      %s22 = sphi 0, %s20
      %s23 = sphi 0, %s22
      %s37 = sphi 0, %s23
      %s43 = sphi 0, %s45
      %s46 = sphi 0, %s43
      %s47 = sphi 0, %s46
      %s63 = sphi 0, %s47
      %s69 = sphi 0, %s71
      %s72 = sphi 0, %s69
      %s73 = sphi 0, %s72
      %s89 = sphi 0, %s73
      %s95 = sphi 0, %s97
      %s98 = sphi 0, %s95
      %s99 = sphi 0, %s98
      %s115 = sphi 0, %s99
    $region4: #{tpu_custom_call.1} parent=1 // loop_header_branch
      %15 = sbr.rel (%p13) target = $region8
    $region5: #{tpu_custom_call.1} parent=1 // loop_body
      %s17 = ssub.s32 %s12, 1
      %s18 = ssub.s32 %s12, 2
      %s19 = sadd.s32 %s12, 1
      %s21 = sadd.s32 %s20, 1
      %p24 = scmp.eq.s32.totalorder %s12, 1
      %p25 = scmp.ne.s32.totalorder %s20, %s22
      %p26 = scmp.eq.s32.totalorder %s12, 0
      %p27 = por %p25, %p26
      %p28 = scmp.ne.s32.totalorder %s20, %s22
      %p29 = scmp.eq.s32.totalorder %s17, 1
      %p30 = por %p28, %p29
      %p31 = scmp.ne.s32.totalorder %s22, %s23
      %p32 = scmp.eq.s32.totalorder %s17, 0
      %p33 = por %p31, %p32
      %p34 = scmp.ne.s32.totalorder %s22, %s23
      %p35 = scmp.eq.s32.totalorder %s18, 1
      %p36 = por %p34, %p35
      %p38 = scmp.ne.s32.totalorder %s23, %s37
      %p39 = scmp.eq.s32.totalorder %s18, 0
      %p40 = por %p38, %p39
      %s41 = ssub.s32 %s12, %s19
      %p42 = scmp.eq.s32.totalorder %s41, 0
      %s44 = sadd.s32 %s43, 1
      %s45 = scalar_select %p42, %s43, %s44
      %p48 = pneg %p42
      %p49 = scmp.eq.s32.totalorder %s12, 1
      %p50 = por %p48, %p49
      %p51 = scmp.ne.s32.totalorder %s43, %s46
      %p52 = scmp.eq.s32.totalorder %s12, 0
      %p53 = por %p51, %p52
      %p54 = scmp.ne.s32.totalorder %s43, %s46
      %p55 = scmp.eq.s32.totalorder %s17, 1
      %p56 = por %p54, %p55
      %p57 = scmp.ne.s32.totalorder %s46, %s47
      %p58 = scmp.eq.s32.totalorder %s17, 0
      %p59 = por %p57, %p58
      %p60 = scmp.ne.s32.totalorder %s46, %s47
      %p61 = scmp.eq.s32.totalorder %s18, 1
      %p62 = por %p60, %p61
      %p64 = scmp.ne.s32.totalorder %s47, %s63
      %p65 = scmp.eq.s32.totalorder %s18, 0
      %p66 = por %p64, %p65
      %s67 = ssub.s32 %s12, %s19
      %p68 = scmp.eq.s32.totalorder %s67, 0
      %s70 = sadd.s32 %s69, 1
      %s71 = scalar_select %p68, %s69, %s70
      %p74 = pneg %p68
      %p75 = scmp.eq.s32.totalorder %s12, 1
      %p76 = por %p74, %p75
      %p77 = scmp.ne.s32.totalorder %s69, %s72
      %p78 = scmp.eq.s32.totalorder %s12, 0
      %p79 = por %p77, %p78
      %p80 = scmp.ne.s32.totalorder %s69, %s72
      %p81 = scmp.eq.s32.totalorder %s17, 1
      %p82 = por %p80, %p81
      %p83 = scmp.ne.s32.totalorder %s72, %s73
      %p84 = scmp.eq.s32.totalorder %s17, 0
      %p85 = por %p83, %p84
      %p86 = scmp.ne.s32.totalorder %s72, %s73
      %p87 = scmp.eq.s32.totalorder %s18, 1
      %p88 = por %p86, %p87
      %p90 = scmp.ne.s32.totalorder %s73, %s89
      %p91 = scmp.eq.s32.totalorder %s18, 0
      %p92 = por %p90, %p91
      %s93 = ssub.s32 %s12, %s19
      %p94 = scmp.eq.s32.totalorder %s93, 0
      %s96 = sadd.s32 %s95, 1
      %s97 = scalar_select %p94, %s95, %s96
      %p100 = pneg %p94
      %p101 = scmp.eq.s32.totalorder %s12, 1
      %p102 = por %p100, %p101
      %p103 = scmp.ne.s32.totalorder %s95, %s98
      %p104 = scmp.eq.s32.totalorder %s12, 0
      %p105 = por %p103, %p104
      %p106 = scmp.ne.s32.totalorder %s95, %s98
      %p107 = scmp.eq.s32.totalorder %s17, 1
      %p108 = por %p106, %p107
      %p109 = scmp.ne.s32.totalorder %s98, %s99
      %p110 = scmp.eq.s32.totalorder %s17, 0
      %p111 = por %p109, %p110
      %p112 = scmp.ne.s32.totalorder %s98, %s99
      %p113 = scmp.eq.s32.totalorder %s18, 1
      %p114 = por %p112, %p113
      %p116 = scmp.ne.s32.totalorder %s99, %s115
      %p117 = scmp.eq.s32.totalorder %s18, 0
      %p118 = por %p116, %p117
      %p119 = scmp.le.s32.totalorder 1, %s12
      %p120 = scmp.lt.s32.totalorder %s12, 3
      %p121 = pnand %p119, %p120
      %p122 = pneg %p121
      // Predicated region
      $region9: #{tpu_custom_call.1} parent=5 // pred_check
        _
      $region10: #{tpu_custom_call.1} parent=5 // pred_check_branch
        %124 = sbr.rel (%p121) target = $region12
      $region11: #{tpu_custom_call.1} parent=5 // pred_region
        %s125 = ssub.s32 %s12, 1
        // Predicated region
        $region13: #{tpu_custom_call.1} parent=11 // pred_check
          %p126 = pneg %p33
        $region14: #{tpu_custom_call.1} parent=11 // pred_check_branch
          %128 = sbr.rel (%p126) target = $region16
        $region15: #{tpu_custom_call.1} parent=11 // pred_region
          _
        $region16: #{tpu_custom_call.1} parent=11 // pred_fallthru
          _
      $region12: #{tpu_custom_call.1} parent=5 // pred_fallthru
        _
      %p129 = scmp.lt.s32.totalorder %s12, 2
      // Predicated region
      $region17: #{tpu_custom_call.1} parent=5 // pred_check
        %p130 = pneg %p129
      $region18: #{tpu_custom_call.1} parent=5 // pred_check_branch
        %132 = sbr.rel (%p130) target = $region20
      $region19: #{tpu_custom_call.1} parent=5 // pred_region
        // Predicated region
        $region21: #{tpu_custom_call.1} parent=19 // pred_check
          %p133 = pneg %p53
        $region22: #{tpu_custom_call.1} parent=19 // pred_check_branch
          %135 = sbr.rel (%p133) target = $region24
        $region23: #{tpu_custom_call.1} parent=19 // pred_region
          %s136 = smul.u32 4, %s12
          %p137 = scmp.lt.s32.totalorder %s136, 7
          %s138 = scalar_select %p137, %s136, 7
          %s139 = smul.addr %s138, 8
          %s140 = scalar_lea.vmem %s1, %s139
          %s141 = smul.u32 4, %s12
        $region24: #{tpu_custom_call.1} parent=19 // pred_fallthru
          _
        // Predicated region
        $region25: #{tpu_custom_call.1} parent=19 // pred_check
          %p142 = pneg %p79
        $region26: #{tpu_custom_call.1} parent=19 // pred_check_branch
          %144 = sbr.rel (%p142) target = $region28
        $region27: #{tpu_custom_call.1} parent=19 // pred_region
          %s145 = smul.u32 4, %s12
          %p146 = scmp.lt.s32.totalorder %s145, 7
          %s147 = scalar_select %p146, %s145, 7
          %s148 = smul.addr %s147, 8
          %s149 = scalar_lea.vmem %s2, %s148
          %s150 = smul.u32 4, %s12
        $region28: #{tpu_custom_call.1} parent=19 // pred_fallthru
          _
      $region20: #{tpu_custom_call.1} parent=5 // pred_fallthru
        _
      %p151 = scmp.le.s32.totalorder 1, %s12
      %p152 = scmp.lt.s32.totalorder %s12, 3
      %p153 = pnand %p151, %p152
      %p154 = pneg %p153
      // Predicated region
      $region29: #{tpu_custom_call.1} parent=5 // pred_check
        _
      $region30: #{tpu_custom_call.1} parent=5 // pred_check_branch
        %156 = sbr.rel (%p153) target = $region32
      $region31: #{tpu_custom_call.1} parent=5 // pred_region
        %s157 = ssub.s32 %s12, 1
        %p158 = pneg %p33
        %p159 = pneg %p30
        %s160 = smul.u32 4, %s17
        %p161 = scmp.lt.s32.totalorder %s160, 7
        %s162 = scalar_select %p161, %s160, 7
        %s163 = smul.addr %s162, 8
        %s164 = scalar_lea.vmem %s1, %s163
        %p165 = pneg %p59
        %p166 = pneg %p56
        %s167 = smul.u32 4, %s17
        %p168 = scmp.lt.s32.totalorder %s167, 7
        %s169 = scalar_select %p168, %s167, 7
        %s170 = smul.addr %s169, 8
        %s171 = scalar_lea.vmem %s2, %s170
        %p172 = pneg %p85
        %p173 = pneg %p82
        %p174 = pneg %p111
        %p175 = pneg %p108
        %s176 = sand.u32 %s98, 1
        %s177 = scalar_lea.sflag [#allocation3], %s176
        %s178 = sand.u32 %s98, 1
        %s179 = smul.addr %s178, 32
        %s180 = scalar_lea.vmem [#allocation2], %s179
        %s181 = smul.u32 4, %s17
        %p182 = scmp.lt.s32.totalorder %s181, 7
        %s183 = scalar_select %p182, %s181, 7
        %s184 = smul.addr %s183, 8
        %s185 = scalar_lea.vmem %s1, %s184
        %s186 = smul.u32 4, %s17
        %s187 = smul.u32 4, %s17
        %p188 = scmp.lt.s32.totalorder %s187, 7
        %s189 = scalar_select %p188, %s187, 7
        %s190 = smul.addr %s189, 8
        %s191 = scalar_lea.vmem %s2, %s190
        %s192 = smul.u32 4, %s17
        %s193 = smul.u32 4, %s17
        %v194 = vld [vmem:[%s185] sm:$0xff]
        %v195 = vld [vmem:[%s185 + $0x8] sm:$0xff]
        %v196 = vld [vmem:[%s185 + $0x10] sm:$0xff]
        %v197 = vld [vmem:[%s185 + $0x18] sm:$0xff]
        %v198 = vld [vmem:[%s191] sm:$0xff]
        %v199 = vld [vmem:[%s191 + $0x8] sm:$0xff]
        %v200 = vld [vmem:[%s191 + $0x10] sm:$0xff]
        %v201 = vld [vmem:[%s191 + $0x18] sm:$0xff]
        %v202 = vsub.f32 %v198, 3.5
        %v203 = vsub.f32 %v199, 3.5
        %v204 = vsub.f32 %v200, 3.5
        %v205 = vsub.f32 %v201, 3.5
        %v206 = vand.u32 2147483647, %v202
        %v207 = vand.u32 2147483647, %v203
        %v208 = vand.u32 2147483647, %v204
        %v209 = vand.u32 2147483647, %v205
        %v210 = vrsqrt.pop %v206
        %v211 = vmul.f32 %v206, %v210
        %vm212 = vcmp.eq.f32.partialorder %v206, inf
        %v213 = vsel %vm212, %v206, %v211
        %vm214 = vcmp.eq.f32.partialorder %v206, 0.0
        %v215 = vand.u32 %v206, 2147483648
        %v216 = vsel %vm214, %v215, %v213
        %v217 = vrsqrt.pop %v207
        %v218 = vmul.f32 %v207, %v217
        %vm219 = vcmp.eq.f32.partialorder %v207, inf
        %v220 = vsel %vm219, %v207, %v218
        %vm221 = vcmp.eq.f32.partialorder %v207, 0.0
        %v222 = vand.u32 %v207, 2147483648
        %v223 = vsel %vm221, %v222, %v220
        %v224 = vrsqrt.pop %v208
        %v225 = vmul.f32 %v208, %v224
        %vm226 = vcmp.eq.f32.partialorder %v208, inf
        %v227 = vsel %vm226, %v208, %v225
        %vm228 = vcmp.eq.f32.partialorder %v208, 0.0
        %v229 = vand.u32 %v208, 2147483648
        %v230 = vsel %vm228, %v229, %v227
        %v231 = vrsqrt.pop %v209
        %v232 = vmul.f32 %v209, %v231
        %vm233 = vcmp.eq.f32.partialorder %v209, inf
        %v234 = vsel %vm233, %v209, %v232
        %vm235 = vcmp.eq.f32.partialorder %v209, 0.0
        %v236 = vand.u32 %v209, 2147483648
        %v237 = vsel %vm235, %v236, %v234
        %v238 = vmul.f32 %v202, %v216
        %v239 = vmul.f32 %v203, %v223
        %v240 = vmul.f32 %v204, %v230
        %v241 = vmul.f32 %v205, %v237
        %v242 = vand.u32 2147483647, %v238
        %v243 = vand.u32 2147483647, %v239
        %v244 = vand.u32 2147483647, %v240
        %v245 = vand.u32 2147483647, %v241
        %vm246 = vcmask 64512
        %v247 = vsel %vm246, %v242, 0.0
        %248 = vadd.xlane.f32.xlu0 %v247
        %v249 = vpop.xlane.xlu0 %248
        %v250 = vsel %vm246, %v243, 0.0
        %251 = vadd.xlane.f32.xlu0 %v250
        %v252 = vpop.xlane.xlu0 %251
        %v253 = vsel %vm246, %v244, 0.0
        %254 = vadd.xlane.f32.xlu0 %v253
        %v255 = vpop.xlane.xlu0 %254
        %v256 = vsel %vm246, %v245, 0.0
        %257 = vadd.xlane.f32.xlu0 %v256
        %v258 = vpop.xlane.xlu0 %257
        %v259 = vmax.f32 %v249, 1.0
        %v260 = vmax.f32 %v252, 1.0
        %v261 = vmax.f32 %v255, 1.0
        %v262 = vmax.f32 %v258, 1.0
        %v263 = vrcp.pop %v259
        %v264 = vmul.f32 %v238, %v263
        %v265 = vrcp.pop %v260
        %v266 = vmul.f32 %v239, %v265
        %v267 = vrcp.pop %v261
        %v268 = vmul.f32 %v240, %v267
        %v269 = vrcp.pop %v262
        %v270 = vmul.f32 %v241, %v269
        %v271 = vlaneseq
        %v272 = vand.u32 %v271, 127
        %273 = vset.pattern.permute.xlu0 0
        %274 = vperm.xlu0 %273, %v194
        %v275 = vpop.permute.xlu0 %274
        %276 = vset.pattern.permute.xlu0 0
        %277 = vperm.xlu0 %276, %v195
        %v278 = vpop.permute.xlu0 %277
        %279 = vset.pattern.permute.xlu0 0
        %280 = vperm.xlu0 %279, %v196
        %v281 = vpop.permute.xlu0 %280
        %282 = vset.pattern.permute.xlu0 0
        %283 = vperm.xlu0 %282, %v197
        %v284 = vpop.permute.xlu0 %283
        %vm285 = vcmp.eq.s32.totalorder %v275, %v272
        %vm286 = vcmp.eq.s32.totalorder %v278, %v272
        %vm287 = vcmp.eq.s32.totalorder %v281, %v272
        %vm288 = vcmp.eq.s32.totalorder %v284, %v272
        %290 = vset.pattern.permute.xlu0 0
        %291 = vperm.xlu0 %290, %v264
        %v292 = vpop.permute.xlu0 %291
        %295 = vset.pattern.permute.xlu0 0
        %296 = vperm.xlu0 %295, %v266
        %v297 = vpop.permute.xlu0 %296
        %300 = vset.pattern.permute.xlu0 0
        %301 = vperm.xlu0 %300, %v268
        %v302 = vpop.permute.xlu0 %301
        %305 = vset.pattern.permute.xlu0 0
        %306 = vperm.xlu0 %305, %v270
        %v307 = vpop.permute.xlu0 %306
        %v309 = vsel %vm285, %v292, 0.0
        %v310 = vsel %vm286, %v297, 0.0
        %v311 = vsel %vm287, %v302, 0.0
        %v312 = vsel %vm288, %v307, 0.0
        %v313 = vadd.f32 %v309, 0.0
        %v314 = vadd.f32 %v310, 0.0
        %v315 = vadd.f32 %v311, 0.0
        %v316 = vadd.f32 %v312, 0.0
        %317 = vset.pattern.permute.xlu0 1
        %318 = vperm.xlu0 %317, %v194
        %v319 = vpop.permute.xlu0 %318
        %320 = vset.pattern.permute.xlu0 1
        %321 = vperm.xlu0 %320, %v195
        %v322 = vpop.permute.xlu0 %321
        %323 = vset.pattern.permute.xlu0 1
        %324 = vperm.xlu0 %323, %v196
        %v325 = vpop.permute.xlu0 %324
        %326 = vset.pattern.permute.xlu0 1
        %327 = vperm.xlu0 %326, %v197
        %v328 = vpop.permute.xlu0 %327
        %vm329 = vcmp.eq.s32.totalorder %v319, %v272
        %vm330 = vcmp.eq.s32.totalorder %v322, %v272
        %vm331 = vcmp.eq.s32.totalorder %v325, %v272
        %vm332 = vcmp.eq.s32.totalorder %v328, %v272
        %333 = vset.pattern.permute.xlu0 1
        %334 = vperm.xlu0 %333, %v264
        %v335 = vpop.permute.xlu0 %334
        %337 = vset.pattern.permute.xlu0 1
        %338 = vperm.xlu0 %337, %v266
        %v339 = vpop.permute.xlu0 %338
        %341 = vset.pattern.permute.xlu0 1
        %342 = vperm.xlu0 %341, %v268
        %v343 = vpop.permute.xlu0 %342
        %345 = vset.pattern.permute.xlu0 1
        %346 = vperm.xlu0 %345, %v270
        %v347 = vpop.permute.xlu0 %346
        %v349 = vsel %vm329, %v335, 0.0
        %v350 = vsel %vm330, %v339, 0.0
        %v351 = vsel %vm331, %v343, 0.0
        %v352 = vsel %vm332, %v347, 0.0
        %v353 = vadd.f32 %v313, %v349
        %v354 = vadd.f32 %v314, %v350
        %v355 = vadd.f32 %v315, %v351
        %v356 = vadd.f32 %v316, %v352
        %357 = vset.pattern.permute.xlu0 2
        %358 = vperm.xlu0 %357, %v194
        %v359 = vpop.permute.xlu0 %358
        %360 = vset.pattern.permute.xlu0 2
        %361 = vperm.xlu0 %360, %v195
        %v362 = vpop.permute.xlu0 %361
        %363 = vset.pattern.permute.xlu0 2
        %364 = vperm.xlu0 %363, %v196
        %v365 = vpop.permute.xlu0 %364
        %366 = vset.pattern.permute.xlu0 2
        %367 = vperm.xlu0 %366, %v197
        %v368 = vpop.permute.xlu0 %367
        %vm369 = vcmp.eq.s32.totalorder %v359, %v272
        %vm370 = vcmp.eq.s32.totalorder %v362, %v272
        %vm371 = vcmp.eq.s32.totalorder %v365, %v272
        %vm372 = vcmp.eq.s32.totalorder %v368, %v272
        %373 = vset.pattern.permute.xlu0 2
        %374 = vperm.xlu0 %373, %v264
        %v375 = vpop.permute.xlu0 %374
        %377 = vset.pattern.permute.xlu0 2
        %378 = vperm.xlu0 %377, %v266
        %v379 = vpop.permute.xlu0 %378
        %381 = vset.pattern.permute.xlu0 2
        %382 = vperm.xlu0 %381, %v268
        %v383 = vpop.permute.xlu0 %382
        %385 = vset.pattern.permute.xlu0 2
        %386 = vperm.xlu0 %385, %v270
        %v387 = vpop.permute.xlu0 %386
        %v389 = vsel %vm369, %v375, 0.0
        %v390 = vsel %vm370, %v379, 0.0
        %v391 = vsel %vm371, %v383, 0.0
        %v392 = vsel %vm372, %v387, 0.0
        %v393 = vadd.f32 %v353, %v389
        %v394 = vadd.f32 %v354, %v390
        %v395 = vadd.f32 %v355, %v391
        %v396 = vadd.f32 %v356, %v392
        %397 = vset.pattern.permute.xlu0 3
        %398 = vperm.xlu0 %397, %v194
        %v399 = vpop.permute.xlu0 %398
        %400 = vset.pattern.permute.xlu0 3
        %401 = vperm.xlu0 %400, %v195
        %v402 = vpop.permute.xlu0 %401
        %403 = vset.pattern.permute.xlu0 3
        %404 = vperm.xlu0 %403, %v196
        %v405 = vpop.permute.xlu0 %404
        %406 = vset.pattern.permute.xlu0 3
        %407 = vperm.xlu0 %406, %v197
        %v408 = vpop.permute.xlu0 %407
        %vm409 = vcmp.eq.s32.totalorder %v399, %v272
        %vm410 = vcmp.eq.s32.totalorder %v402, %v272
        %vm411 = vcmp.eq.s32.totalorder %v405, %v272
        %vm412 = vcmp.eq.s32.totalorder %v408, %v272
        %413 = vset.pattern.permute.xlu0 3
        %414 = vperm.xlu0 %413, %v264
        %v415 = vpop.permute.xlu0 %414
        %417 = vset.pattern.permute.xlu0 3
        %418 = vperm.xlu0 %417, %v266
        %v419 = vpop.permute.xlu0 %418
        %421 = vset.pattern.permute.xlu0 3
        %422 = vperm.xlu0 %421, %v268
        %v423 = vpop.permute.xlu0 %422
        %425 = vset.pattern.permute.xlu0 3
        %426 = vperm.xlu0 %425, %v270
        %v427 = vpop.permute.xlu0 %426
        %v429 = vsel %vm409, %v415, 0.0
        %v430 = vsel %vm410, %v419, 0.0
        %v431 = vsel %vm411, %v423, 0.0
        %v432 = vsel %vm412, %v427, 0.0
        %v433 = vadd.f32 %v393, %v429
        %v434 = vadd.f32 %v394, %v430
        %v435 = vadd.f32 %v395, %v431
        %v436 = vadd.f32 %v396, %v432
        %437 = vset.pattern.permute.xlu0 4
        %438 = vperm.xlu0 %437, %v194
        %v439 = vpop.permute.xlu0 %438
        %440 = vset.pattern.permute.xlu0 4
        %441 = vperm.xlu0 %440, %v195
        %v442 = vpop.permute.xlu0 %441
        %443 = vset.pattern.permute.xlu0 4
        %444 = vperm.xlu0 %443, %v196
        %v445 = vpop.permute.xlu0 %444
        %446 = vset.pattern.permute.xlu0 4
        %447 = vperm.xlu0 %446, %v197
        %v448 = vpop.permute.xlu0 %447
        %vm449 = vcmp.eq.s32.totalorder %v439, %v272
        %vm450 = vcmp.eq.s32.totalorder %v442, %v272
        %vm451 = vcmp.eq.s32.totalorder %v445, %v272
        %vm452 = vcmp.eq.s32.totalorder %v448, %v272
        %453 = vset.pattern.permute.xlu0 4
        %454 = vperm.xlu0 %453, %v264
        %v455 = vpop.permute.xlu0 %454
        %457 = vset.pattern.permute.xlu0 4
        %458 = vperm.xlu0 %457, %v266
        %v459 = vpop.permute.xlu0 %458
        %461 = vset.pattern.permute.xlu0 4
        %462 = vperm.xlu0 %461, %v268
        %v463 = vpop.permute.xlu0 %462
        %465 = vset.pattern.permute.xlu0 4
        %466 = vperm.xlu0 %465, %v270
        %v467 = vpop.permute.xlu0 %466
        %v469 = vsel %vm449, %v455, 0.0
        %v470 = vsel %vm450, %v459, 0.0
        %v471 = vsel %vm451, %v463, 0.0
        %v472 = vsel %vm452, %v467, 0.0
        %v473 = vadd.f32 %v433, %v469
        %v474 = vadd.f32 %v434, %v470
        %v475 = vadd.f32 %v435, %v471
        %v476 = vadd.f32 %v436, %v472
        %477 = vset.pattern.permute.xlu0 5
        %478 = vperm.xlu0 %477, %v194
        %v479 = vpop.permute.xlu0 %478
        %480 = vset.pattern.permute.xlu0 5
        %481 = vperm.xlu0 %480, %v195
        %v482 = vpop.permute.xlu0 %481
        %483 = vset.pattern.permute.xlu0 5
        %484 = vperm.xlu0 %483, %v196
        %v485 = vpop.permute.xlu0 %484
        %486 = vset.pattern.permute.xlu0 5
        %487 = vperm.xlu0 %486, %v197
        %v488 = vpop.permute.xlu0 %487
        %vm489 = vcmp.eq.s32.totalorder %v479, %v272
        %vm490 = vcmp.eq.s32.totalorder %v482, %v272
        %vm491 = vcmp.eq.s32.totalorder %v485, %v272
        %vm492 = vcmp.eq.s32.totalorder %v488, %v272
        %493 = vset.pattern.permute.xlu0 5
        %494 = vperm.xlu0 %493, %v264
        %v495 = vpop.permute.xlu0 %494
        %497 = vset.pattern.permute.xlu0 5
        %498 = vperm.xlu0 %497, %v266
        %v499 = vpop.permute.xlu0 %498
        %501 = vset.pattern.permute.xlu0 5
        %502 = vperm.xlu0 %501, %v268
        %v503 = vpop.permute.xlu0 %502
        %505 = vset.pattern.permute.xlu0 5
        %506 = vperm.xlu0 %505, %v270
        %v507 = vpop.permute.xlu0 %506
        %v509 = vsel %vm489, %v495, 0.0
        %v510 = vsel %vm490, %v499, 0.0
        %v511 = vsel %vm491, %v503, 0.0
        %v512 = vsel %vm492, %v507, 0.0
        %v513 = vadd.f32 %v473, %v509
        %v514 = vadd.f32 %v474, %v510
        %v515 = vadd.f32 %v475, %v511
        %v516 = vadd.f32 %v476, %v512
        %517 = vset.pattern.permute.xlu0 6
        %518 = vperm.xlu0 %517, %v194
        %v519 = vpop.permute.xlu0 %518
        %520 = vset.pattern.permute.xlu0 6
        %521 = vperm.xlu0 %520, %v195
        %v522 = vpop.permute.xlu0 %521
        %523 = vset.pattern.permute.xlu0 6
        %524 = vperm.xlu0 %523, %v196
        %v525 = vpop.permute.xlu0 %524
        %526 = vset.pattern.permute.xlu0 6
        %527 = vperm.xlu0 %526, %v197
        %v528 = vpop.permute.xlu0 %527
        %vm529 = vcmp.eq.s32.totalorder %v519, %v272
        %vm530 = vcmp.eq.s32.totalorder %v522, %v272
        %vm531 = vcmp.eq.s32.totalorder %v525, %v272
        %vm532 = vcmp.eq.s32.totalorder %v528, %v272
        %533 = vset.pattern.permute.xlu0 6
        %534 = vperm.xlu0 %533, %v264
        %v535 = vpop.permute.xlu0 %534
        %537 = vset.pattern.permute.xlu0 6
        %538 = vperm.xlu0 %537, %v266
        %v539 = vpop.permute.xlu0 %538
        %541 = vset.pattern.permute.xlu0 6
        %542 = vperm.xlu0 %541, %v268
        %v543 = vpop.permute.xlu0 %542
        %545 = vset.pattern.permute.xlu0 6
        %546 = vperm.xlu0 %545, %v270
        %v547 = vpop.permute.xlu0 %546
        %v549 = vsel %vm529, %v535, 0.0
        %v550 = vsel %vm530, %v539, 0.0
        %v551 = vsel %vm531, %v543, 0.0
        %v552 = vsel %vm532, %v547, 0.0
        %v553 = vadd.f32 %v513, %v549
        %v554 = vadd.f32 %v514, %v550
        %v555 = vadd.f32 %v515, %v551
        %v556 = vadd.f32 %v516, %v552
        %557 = vset.pattern.permute.xlu0 7
        %558 = vperm.xlu0 %557, %v194
        %v559 = vpop.permute.xlu0 %558
        %560 = vset.pattern.permute.xlu0 7
        %561 = vperm.xlu0 %560, %v195
        %v562 = vpop.permute.xlu0 %561
        %563 = vset.pattern.permute.xlu0 7
        %564 = vperm.xlu0 %563, %v196
        %v565 = vpop.permute.xlu0 %564
        %566 = vset.pattern.permute.xlu0 7
        %567 = vperm.xlu0 %566, %v197
        %v568 = vpop.permute.xlu0 %567
        %vm569 = vcmp.eq.s32.totalorder %v559, %v272
        %vm570 = vcmp.eq.s32.totalorder %v562, %v272
        %vm571 = vcmp.eq.s32.totalorder %v565, %v272
        %vm572 = vcmp.eq.s32.totalorder %v568, %v272
        %573 = vset.pattern.permute.xlu0 7
        %574 = vperm.xlu0 %573, %v264
        %v575 = vpop.permute.xlu0 %574
        %577 = vset.pattern.permute.xlu0 7
        %578 = vperm.xlu0 %577, %v266
        %v579 = vpop.permute.xlu0 %578
        %581 = vset.pattern.permute.xlu0 7
        %582 = vperm.xlu0 %581, %v268
        %v583 = vpop.permute.xlu0 %582
        %585 = vset.pattern.permute.xlu0 7
        %586 = vperm.xlu0 %585, %v270
        %v587 = vpop.permute.xlu0 %586
        %v589 = vsel %vm569, %v575, 0.0
        %v590 = vsel %vm570, %v579, 0.0
        %v591 = vsel %vm571, %v583, 0.0
        %v592 = vsel %vm572, %v587, 0.0
        %v593 = vadd.f32 %v553, %v589
        %v594 = vadd.f32 %v554, %v590
        %v595 = vadd.f32 %v555, %v591
        %v596 = vadd.f32 %v556, %v592
        %v597 = vld [vmem:[%s0] sm:$0xff]
        %v598 = vld [vmem:[%s0 + $0x8] sm:$0xff]
        %v599 = vld [vmem:[%s0 + $0x10] sm:$0xff]
        %v600 = vld [vmem:[%s0 + $0x18] sm:$0xff]
        %v601 = vld [vmem:[%s0 + $0x20] sm:$0xff]
        %v602 = vld [vmem:[%s0 + $0x28] sm:$0xff]
        %v603 = vld [vmem:[%s0 + $0x30] sm:$0xff]
        %v604 = vld [vmem:[%s0 + $0x38] sm:$0xff]
        %v605 = vld [vmem:[%s0 + $0x40] sm:$0xff]
        %v606 = vld [vmem:[%s0 + $0x48] sm:$0xff]
        %v607 = vld [vmem:[%s0 + $0x50] sm:$0xff]
        %v608 = vld [vmem:[%s0 + $0x58] sm:$0xff]
        %v609 = vld [vmem:[%s0 + $0x60] sm:$0xff]
        %v610 = vld [vmem:[%s0 + $0x68] sm:$0xff]
        %v611 = vld [vmem:[%s0 + $0x70] sm:$0xff]
        %v612 = vld [vmem:[%s0 + $0x78] sm:$0xff]
        %613 = vmatprep.subr.mxu0 0.0
        %614 = vmatpush1.msra.mxu0 %v597
        %615 = vmatprep.subr.mxu0 0.0
        %616 = vmatpush1.msra.mxu0 %v598
        %617 = vmatprep.subr.mxu0 0.0
        %618 = vmatpush1.msra.mxu0 %v599
        %619 = vmatprep.subr.mxu0 0.0
        %620 = vmatpush1.msra.mxu0 %v600
        %621 = vmatprep.subr.mxu0 0.0
        %622 = vmatpush1.msra.mxu0 %v601
        %623 = vmatprep.subr.mxu0 0.0
        %624 = vmatpush1.msra.mxu0 %v602
        %625 = vmatprep.subr.mxu0 0.0
        %626 = vmatpush1.msra.mxu0 %v603
        %627 = vmatprep.subr.mxu0 0.0
        %628 = vmatpush1.msra.mxu0 %v604
        %629 = vmatprep.subr.mxu0 0.0
        %630 = vmatpush1.msra.mxu0 %v605
        %631 = vmatprep.subr.mxu0 0.0
        %632 = vmatpush1.msra.mxu0 %v606
        %633 = vmatprep.subr.mxu0 0.0
        %634 = vmatpush1.msra.mxu0 %v607
        %635 = vmatprep.subr.mxu0 0.0
        %636 = vmatpush1.msra.mxu0 %v608
        %637 = vmatprep.subr.mxu0 0.0
        %638 = vmatpush1.msra.mxu0 %v609
        %639 = vmatprep.subr.mxu0 0.0
        %640 = vmatpush1.msra.mxu0 %v610
        %641 = vmatprep.subr.mxu0 0.0
        %642 = vmatpush1.msra.mxu0 %v611
        %643 = vmatprep.subr.mxu0 0.0
        %644 = vmatpush1.msra.mxu0 %v612
        %645 = vmatprep.subr.mxu0 0.0
        %646 = vmatpush1.msra.mxu0 0.0
        %647 = vmatprep.subr.mxu0 0.0
        %648 = vmatpush1.msra.mxu0 0.0
        %649 = vmatprep.subr.mxu0 0.0
        %650 = vmatpush1.msra.mxu0 0.0
        %651 = vmatprep.subr.mxu0 0.0
        %652 = vmatpush1.msra.mxu0 0.0
        %653 = vmatprep.subr.mxu0 0.0
        %654 = vmatpush1.msra.mxu0 0.0
        %655 = vmatprep.subr.mxu0 0.0
        %656 = vmatpush1.msra.mxu0 0.0
        %657 = vmatprep.subr.mxu0 0.0
        %658 = vmatpush1.msra.mxu0 0.0
        %659 = vmatprep.subr.mxu0 0.0
        %660 = vmatpush1.msra.mxu0 0.0
        %661 = vmatprep.subr.mxu0 0.0
        %662 = vmatpush1.msra.mxu0 0.0
        %663 = vmatprep.subr.mxu0 0.0
        %664 = vmatpush1.msra.mxu0 0.0
        %665 = vmatprep.subr.mxu0 0.0
        %666 = vmatpush1.msra.mxu0 0.0
        %667 = vmatprep.subr.mxu0 0.0
        %668 = vmatpush1.msra.mxu0 0.0
        %669 = vmatprep.subr.mxu0 0.0
        %670 = vmatpush1.msra.mxu0 0.0
        %671 = vmatprep.subr.mxu0 0.0
        %672 = vmatpush1.msra.mxu0 0.0
        %673 = vmatprep.subr.mxu0 0.0
        %674 = vmatpush1.msra.mxu0 0.0
        %675 = vmatprep.subr.mxu0 0.0
        %676 = vmatpush1.msra.mxu0 0.0
        %677 = vmatprep.mubr.f32.mxu0 0.0
        %678 = vmatmul.mubr.f32.gmra.mrb[0].mxu0 %v593
        %v679 = vpop.f32.mrb[0].mxu0
        %v680 = vadd.f32 0.0, %v679
        %v681 = vpop.f32.mrb[0].mxu0
        %682 = vmatprep.mubr.f32.mxu0 0.0
        %683 = vmatmul.mubr.f32.gmra.mrb[0].mxu0 %v594
        %v684 = vpop.f32.mrb[0].mxu0
        %v685 = vadd.f32 0.0, %v684
        %v686 = vpop.f32.mrb[0].mxu0
        %687 = vmatprep.mubr.f32.mxu0 0.0
        %688 = vmatmul.mubr.f32.gmra.mrb[0].mxu0 %v595
        %v689 = vpop.f32.mrb[0].mxu0
        %v690 = vadd.f32 0.0, %v689
        %v691 = vpop.f32.mrb[0].mxu0
        %692 = vmatprep.mubr.f32.mxu0 0.0
        %693 = vmatmul.mubr.f32.gmra.mrb[0].mxu0 %v596
        %v694 = vpop.f32.mrb[0].mxu0
        %v695 = vadd.f32 0.0, %v694
        %v696 = vpop.f32.mrb[0].mxu0
        %697 = vdwg.mxu0
        %698 = vst [vmem:[%s180] sm:$0xff] %v680
        %699 = vst [vmem:[%s180 + $0x8] sm:$0xff] %v685
        %700 = vst [vmem:[%s180 + $0x10] sm:$0xff] %v690
        %701 = vst [vmem:[%s180 + $0x18] sm:$0xff] %v695
        %s702 = sand.u32 %s98, 1
        %s703 = scalar_lea.sflag [#allocation3], %s702
        %s704 = sand.u32 %s98, 1
        %s705 = smul.addr %s704, 32
        %s706 = scalar_lea.vmem [#allocation2], %s705
        // Predicated region
        $region33: #{tpu_custom_call.1} parent=31 // pred_check
          %p707 = pneg %p108
        $region34: #{tpu_custom_call.1} parent=31 // pred_check_branch
          %709 = sbr.rel (%p707) target = $region36
        $region35: #{tpu_custom_call.1} parent=31 // pred_region
          %s710 = smul.u32 4, %s17
          %s712 = ssub.s32 512, 512
          %713 = vsyncadd %s703, %s712
          %s714 = smul.addr %s710, 128
          %s715 = scalar_lea.hbm %s3, %s714
          %s716 = sshll.u32 %s706, 4
          %s717 = int_to_ptr.vmem [resolvable:$true] %s716
          %722 = dma.vmem_to_hbm [thread:$0]  %s717, 512, %s715, %s703, 128, 128, 8
        $region36: #{tpu_custom_call.1} parent=31 // pred_fallthru
          _
      $region32: #{tpu_custom_call.1} parent=5 // pred_fallthru
        _
      %p723 = scmp.le.s32.totalorder 2, %s12
      // Predicated region
      $region37: #{tpu_custom_call.1} parent=5 // pred_check
        %p724 = pneg %p723
      $region38: #{tpu_custom_call.1} parent=5 // pred_check_branch
        %726 = sbr.rel (%p724) target = $region40
      $region39: #{tpu_custom_call.1} parent=5 // pred_region
        %s727 = ssub.s32 %s12, 2
        // Predicated region
        $region41: #{tpu_custom_call.1} parent=39 // pred_check
          %p728 = pneg %p114
        $region42: #{tpu_custom_call.1} parent=39 // pred_check_branch
          %730 = sbr.rel (%p728) target = $region44
        $region43: #{tpu_custom_call.1} parent=39 // pred_region
          %s731 = sand.u32 %s99, 1
          %s732 = scalar_lea.sflag [#allocation3], %s731
          %s733 = sand.u32 %s99, 1
          %s734 = smul.addr %s733, 32
          %s735 = scalar_lea.vmem [#allocation2], %s734
          %736 = dma.done %s732, 512
        $region44: #{tpu_custom_call.1} parent=39 // pred_fallthru
          _
      $region40: #{tpu_custom_call.1} parent=5 // pred_fallthru
        _
    $region6: #{tpu_custom_call.1} parent=1 // loop_footer
      %s16 = sadd.s32 1, %s12
    $region7: #{tpu_custom_call.1} parent=1 // loop_footer_branch
      %11 = sbr.rel target = $region3
    $region8: #{tpu_custom_call.1} parent=1 // loop_exit
      _
    %737 = vsyncpa [#allocation3], 1
    %s738 = scalar_lea.sflag [#allocation3], 1
    %739 = vsyncpa %s738, 1

// kernel: tpu_custom_call.1
$region0: #{tpu_custom_call.1}
  #allocation0 [shape = 'u32[]', space=smem, size = 0x4, offset = 0x4, fixed_abs, tag = 'smem constant byte address 0x4 - core index']
  #allocation1 [shape = 'u32[144,128]{1,0:T(1,128)}', space=vmem, size = 0x12000, scoped, tag = 'internal scratch']
  %s0 = inlined_call_operand.vmem [shape: f32[128,128], index: 0, kind: input, shape index: {}]
  %s1 = inlined_call_operand.vmem [shape: s32[64,8], index: 1, kind: input, shape index: {}]
  %s2 = inlined_call_operand.vmem [shape: f32[64,8], index: 2, kind: input, shape index: {}]
  %s3 = inlined_call_operand.hbm [shape: f32[64,128], index: 3, kind: output, shape index: {}]
  %s4 = sld [smem:[#allocation0]]
  $region45: #{tpu_custom_call.1} parent=0
    _
  %s6 = ssub.s32 1, %s4
  %s7 = scalar_select 0, %s6, %s4
  $region1: #{tpu_custom_call.1} parent=0
    #allocation2 [shape = 'u8[32768]{0}', space=vmem, size = 0x8000, scoped, tag = 'output window, operand 0']
    #allocation3 [shape = 's32[2]{0}', space=sflag, size = 0x8, scoped, tag = 'scoped memory for tpu_custom_call.1']
    %8 = vsyncpa [#allocation3], 0
    %s9 = scalar_lea.sflag [#allocation3], 1
    %10 = vsyncpa %s9, 0
    loop: start=0, step=1, limit=4
    $region2: #{tpu_custom_call.1} parent=1 // loop_pre_header
      _
    $region3: #{tpu_custom_call.1} parent=1 // loop_header
      %s12 = sphi 0, %s16
      %p13 = scmp.ge.s32.totalorder %s12, 4
      %s20 = sphi 0, %s20
      %s22 = sphi 0, %s20
      %s23 = sphi 0, %s22
      %s37 = sphi 0, %s23
      %s43 = sphi 0, %s45
      %s46 = sphi 0, %s43
      %s47 = sphi 0, %s46
      %s63 = sphi 0, %s47
      %s69 = sphi 0, %s71
      %s72 = sphi 0, %s69
      %s73 = sphi 0, %s72
      %s89 = sphi 0, %s73
      %s95 = sphi 0, %s97
      %s98 = sphi 0, %s95
      %s99 = sphi 0, %s98
      %s115 = sphi 0, %s99
    $region4: #{tpu_custom_call.1} parent=1 // loop_header_branch
      %15 = sbr.rel (%p13) target = $region8
    $region5: #{tpu_custom_call.1} parent=1 // loop_body
      %s17 = ssub.s32 %s12, 1
      %s18 = ssub.s32 %s12, 2
      %s19 = sadd.s32 %s12, 1
      %s21 = sadd.s32 %s20, 1
      %p24 = scmp.eq.s32.totalorder %s12, 1
      %p25 = scmp.ne.s32.totalorder %s20, %s22
      %p26 = scmp.eq.s32.totalorder %s12, 0
      %p27 = por %p25, %p26
      %p28 = scmp.ne.s32.totalorder %s20, %s22
      %p29 = scmp.eq.s32.totalorder %s17, 1
      %p30 = por %p28, %p29
      %p31 = scmp.ne.s32.totalorder %s22, %s23
      %p32 = scmp.eq.s32.totalorder %s17, 0
      %p33 = por %p31, %p32
      %p34 = scmp.ne.s32.totalorder %s22, %s23
      %p35 = scmp.eq.s32.totalorder %s18, 1
      %p36 = por %p34, %p35
      %p38 = scmp.ne.s32.totalorder %s23, %s37
      %p39 = scmp.eq.s32.totalorder %s18, 0
      %p40 = por %p38, %p39
      %s41 = ssub.s32 %s12, %s19
      %p42 = scmp.eq.s32.totalorder %s41, 0
      %s44 = sadd.s32 %s43, 1
      %s45 = scalar_select %p42, %s43, %s44
      %p48 = pneg %p42
      %p49 = scmp.eq.s32.totalorder %s12, 1
      %p50 = por %p48, %p49
      %p51 = scmp.ne.s32.totalorder %s43, %s46
      %p52 = scmp.eq.s32.totalorder %s12, 0
      %p53 = por %p51, %p52
      %p54 = scmp.ne.s32.totalorder %s43, %s46
      %p55 = scmp.eq.s32.totalorder %s17, 1
      %p56 = por %p54, %p55
      %p57 = scmp.ne.s32.totalorder %s46, %s47
      %p58 = scmp.eq.s32.totalorder %s17, 0
      %p59 = por %p57, %p58
      %p60 = scmp.ne.s32.totalorder %s46, %s47
      %p61 = scmp.eq.s32.totalorder %s18, 1
      %p62 = por %p60, %p61
      %p64 = scmp.ne.s32.totalorder %s47, %s63
      %p65 = scmp.eq.s32.totalorder %s18, 0
      %p66 = por %p64, %p65
      %s67 = ssub.s32 %s12, %s19
      %p68 = scmp.eq.s32.totalorder %s67, 0
      %s70 = sadd.s32 %s69, 1
      %s71 = scalar_select %p68, %s69, %s70
      %p74 = pneg %p68
      %p75 = scmp.eq.s32.totalorder %s12, 1
      %p76 = por %p74, %p75
      %p77 = scmp.ne.s32.totalorder %s69, %s72
      %p78 = scmp.eq.s32.totalorder %s12, 0
      %p79 = por %p77, %p78
      %p80 = scmp.ne.s32.totalorder %s69, %s72
      %p81 = scmp.eq.s32.totalorder %s17, 1
      %p82 = por %p80, %p81
      %p83 = scmp.ne.s32.totalorder %s72, %s73
      %p84 = scmp.eq.s32.totalorder %s17, 0
      %p85 = por %p83, %p84
      %p86 = scmp.ne.s32.totalorder %s72, %s73
      %p87 = scmp.eq.s32.totalorder %s18, 1
      %p88 = por %p86, %p87
      %p90 = scmp.ne.s32.totalorder %s73, %s89
      %p91 = scmp.eq.s32.totalorder %s18, 0
      %p92 = por %p90, %p91
      %s93 = ssub.s32 %s12, %s19
      %p94 = scmp.eq.s32.totalorder %s93, 0
      %s96 = sadd.s32 %s95, 1
      %s97 = scalar_select %p94, %s95, %s96
      %p100 = pneg %p94
      %p101 = scmp.eq.s32.totalorder %s12, 1
      %p102 = por %p100, %p101
      %p103 = scmp.ne.s32.totalorder %s95, %s98
      %p104 = scmp.eq.s32.totalorder %s12, 0
      %p105 = por %p103, %p104
      %p106 = scmp.ne.s32.totalorder %s95, %s98
      %p107 = scmp.eq.s32.totalorder %s17, 1
      %p108 = por %p106, %p107
      %p109 = scmp.ne.s32.totalorder %s98, %s99
      %p110 = scmp.eq.s32.totalorder %s17, 0
      %p111 = por %p109, %p110
      %p112 = scmp.ne.s32.totalorder %s98, %s99
      %p113 = scmp.eq.s32.totalorder %s18, 1
      %p114 = por %p112, %p113
      %p116 = scmp.ne.s32.totalorder %s99, %s115
      %p117 = scmp.eq.s32.totalorder %s18, 0
      %p118 = por %p116, %p117
      %p119 = scmp.le.s32.totalorder 1, %s12
      %p120 = scmp.lt.s32.totalorder %s12, 3
      %p121 = pnand %p119, %p120
      %p122 = pneg %p121
      // Predicated region
      $region9: #{tpu_custom_call.1} parent=5 // pred_check
        _
      $region10: #{tpu_custom_call.1} parent=5 // pred_check_branch
        %124 = sbr.rel (%p121) target = $region12
      $region11: #{tpu_custom_call.1} parent=5 // pred_region
        %s125 = ssub.s32 %s12, 1
        // Predicated region
        $region13: #{tpu_custom_call.1} parent=11 // pred_check
          %p126 = pneg %p33
        $region14: #{tpu_custom_call.1} parent=11 // pred_check_branch
          %128 = sbr.rel (%p126) target = $region16
        $region15: #{tpu_custom_call.1} parent=11 // pred_region
          _
        $region16: #{tpu_custom_call.1} parent=11 // pred_fallthru
          _
      $region12: #{tpu_custom_call.1} parent=5 // pred_fallthru
        _
      %p129 = scmp.lt.s32.totalorder %s12, 2
      // Predicated region
      $region17: #{tpu_custom_call.1} parent=5 // pred_check
        %p130 = pneg %p129
      $region18: #{tpu_custom_call.1} parent=5 // pred_check_branch
        %132 = sbr.rel (%p130) target = $region20
      $region19: #{tpu_custom_call.1} parent=5 // pred_region
        // Predicated region
        $region21: #{tpu_custom_call.1} parent=19 // pred_check
          %p133 = pneg %p53
        $region22: #{tpu_custom_call.1} parent=19 // pred_check_branch
          %135 = sbr.rel (%p133) target = $region24
        $region23: #{tpu_custom_call.1} parent=19 // pred_region
          %s136 = smul.u32 4, %s12
          %p137 = scmp.lt.s32.totalorder %s136, 7
          %s138 = scalar_select %p137, %s136, 7
          %s139 = smul.addr %s138, 8
          %s140 = scalar_lea.vmem %s1, %s139
          %s141 = smul.u32 4, %s12
        $region24: #{tpu_custom_call.1} parent=19 // pred_fallthru
          _
        // Predicated region
        $region25: #{tpu_custom_call.1} parent=19 // pred_check
          %p142 = pneg %p79
        $region26: #{tpu_custom_call.1} parent=19 // pred_check_branch
          %144 = sbr.rel (%p142) target = $region28
        $region27: #{tpu_custom_call.1} parent=19 // pred_region
          %s145 = smul.u32 4, %s12
          %p146 = scmp.lt.s32.totalorder %s145, 7
          %s147 = scalar_select %p146, %s145, 7
          %s148 = smul.addr %s147, 8
          %s149 = scalar_lea.vmem %s2, %s148
          %s150 = smul.u32 4, %s12
        $region28: #{tpu_custom_call.1} parent=19 // pred_fallthru
          _
      $region20: #{tpu_custom_call.1} parent=5 // pred_fallthru
        _
      %p151 = scmp.le.s32.totalorder 1, %s12
      %p152 = scmp.lt.s32.totalorder %s12, 3
      %p153 = pnand %p151, %p152
      %p154 = pneg %p153
      // Predicated region
      $region29: #{tpu_custom_call.1} parent=5 // pred_check
        _
      $region30: #{tpu_custom_call.1} parent=5 // pred_check_branch
        %156 = sbr.rel (%p153) target = $region32
      $region31: #{tpu_custom_call.1} parent=5 // pred_region
        %s157 = ssub.s32 %s12, 1
        %p158 = pneg %p33
        %p159 = pneg %p30
        %s160 = smul.u32 4, %s17
        %p161 = scmp.lt.s32.totalorder %s160, 7
        %s162 = scalar_select %p161, %s160, 7
        %s163 = smul.addr %s162, 8
        %s164 = scalar_lea.vmem %s1, %s163
        %p165 = pneg %p59
        %p166 = pneg %p56
        %s167 = smul.u32 4, %s17
        %p168 = scmp.lt.s32.totalorder %s167, 7
        %s169 = scalar_select %p168, %s167, 7
        %s170 = smul.addr %s169, 8
        %s171 = scalar_lea.vmem %s2, %s170
        %p172 = pneg %p85
        %p173 = pneg %p82
        %p174 = pneg %p111
        %p175 = pneg %p108
        %s176 = sand.u32 %s98, 1
        %s177 = scalar_lea.sflag [#allocation3], %s176
        %s178 = sand.u32 %s98, 1
        %s179 = smul.addr %s178, 32
        %s180 = scalar_lea.vmem [#allocation2], %s179
        %s181 = smul.u32 4, %s17
        %p182 = scmp.lt.s32.totalorder %s181, 7
        %s183 = scalar_select %p182, %s181, 7
        %s184 = smul.addr %s183, 8
        %s185 = scalar_lea.vmem %s1, %s184
        %s186 = smul.u32 4, %s17
        %s187 = smul.u32 4, %s17
        %p188 = scmp.lt.s32.totalorder %s187, 7
        %s189 = scalar_select %p188, %s187, 7
        %s190 = smul.addr %s189, 8
        %s191 = scalar_lea.vmem %s2, %s190
        %s192 = smul.u32 4, %s17
        %s193 = smul.u32 4, %s17
        %v194 = vld [vmem:[%s185] sm:$0xff]
        %v195 = vld [vmem:[%s185 + $0x8] sm:$0xff]
        %v196 = vld [vmem:[%s185 + $0x10] sm:$0xff]
        %v197 = vld [vmem:[%s185 + $0x18] sm:$0xff]
        %v198 = vld [vmem:[%s191] sm:$0xff]
        %v199 = vld [vmem:[%s191 + $0x8] sm:$0xff]
        %v200 = vld [vmem:[%s191 + $0x10] sm:$0xff]
        %v201 = vld [vmem:[%s191 + $0x18] sm:$0xff]
        %v202 = vsub.f32 %v198, 3.5
        %v203 = vsub.f32 %v199, 3.5
        %v204 = vsub.f32 %v200, 3.5
        %v205 = vsub.f32 %v201, 3.5
        %v206 = vand.u32 2147483647, %v202
        %v207 = vand.u32 2147483647, %v203
        %v208 = vand.u32 2147483647, %v204
        %v209 = vand.u32 2147483647, %v205
        %v210 = vrsqrt.pop %v206
        %v211 = vmul.f32 %v206, %v210
        %vm212 = vcmp.eq.f32.partialorder %v206, inf
        %v213 = vsel %vm212, %v206, %v211
        %vm214 = vcmp.eq.f32.partialorder %v206, 0.0
        %v215 = vand.u32 %v206, 2147483648
        %v216 = vsel %vm214, %v215, %v213
        %v217 = vrsqrt.pop %v207
        %v218 = vmul.f32 %v207, %v217
        %vm219 = vcmp.eq.f32.partialorder %v207, inf
        %v220 = vsel %vm219, %v207, %v218
        %vm221 = vcmp.eq.f32.partialorder %v207, 0.0
        %v222 = vand.u32 %v207, 2147483648
        %v223 = vsel %vm221, %v222, %v220
        %v224 = vrsqrt.pop %v208
        %v225 = vmul.f32 %v208, %v224
        %vm226 = vcmp.eq.f32.partialorder %v208, inf
        %v227 = vsel %vm226, %v208, %v225
        %vm228 = vcmp.eq.f32.partialorder %v208, 0.0
        %v229 = vand.u32 %v208, 2147483648
        %v230 = vsel %vm228, %v229, %v227
        %v231 = vrsqrt.pop %v209
        %v232 = vmul.f32 %v209, %v231
        %vm233 = vcmp.eq.f32.partialorder %v209, inf
        %v234 = vsel %vm233, %v209, %v232
        %vm235 = vcmp.eq.f32.partialorder %v209, 0.0
        %v236 = vand.u32 %v209, 2147483648
        %v237 = vsel %vm235, %v236, %v234
        %v238 = vmul.f32 %v202, %v216
        %v239 = vmul.f32 %v203, %v223
        %v240 = vmul.f32 %v204, %v230
        %v241 = vmul.f32 %v205, %v237
        %v242 = vand.u32 2147483647, %v238
        %v243 = vand.u32 2147483647, %v239
        %v244 = vand.u32 2147483647, %v240
        %v245 = vand.u32 2147483647, %v241
        %vm246 = vcmask 64512
        %v247 = vsel %vm246, %v242, 0.0
        %248 = vadd.xlane.f32.xlu0 %v247
        %v249 = vpop.xlane.xlu0 %248
        %v250 = vsel %vm246, %v243, 0.0
        %251 = vadd.xlane.f32.xlu0 %v250
        %v252 = vpop.xlane.xlu0 %251
        %v253 = vsel %vm246, %v244, 0.0
        %254 = vadd.xlane.f32.xlu0 %v253
        %v255 = vpop.xlane.xlu0 %254
        %v256 = vsel %vm246, %v245, 0.0
        %257 = vadd.xlane.f32.xlu0 %v256
        %v258 = vpop.xlane.xlu0 %257
        %v259 = vmax.f32 %v249, 1.0
        %v260 = vmax.f32 %v252, 1.0
        %v261 = vmax.f32 %v255, 1.0
        %v262 = vmax.f32 %v258, 1.0
        %v263 = vrcp.pop %v259
        %v264 = vmul.f32 %v238, %v263
        %v265 = vrcp.pop %v260
        %v266 = vmul.f32 %v239, %v265
        %v267 = vrcp.pop %v261
        %v268 = vmul.f32 %v240, %v267
        %v269 = vrcp.pop %v262
        %v270 = vmul.f32 %v241, %v269
        %v271 = vlaneseq
        %v272 = vand.u32 %v271, 127
        %273 = vset.pattern.permute.xlu0 0
        %274 = vperm.xlu0 %273, %v194
        %v275 = vpop.permute.xlu0 %274
        %276 = vset.pattern.permute.xlu0 0
        %277 = vperm.xlu0 %276, %v195
        %v278 = vpop.permute.xlu0 %277
        %279 = vset.pattern.permute.xlu0 0
        %280 = vperm.xlu0 %279, %v196
        %v281 = vpop.permute.xlu0 %280
        %282 = vset.pattern.permute.xlu0 0
        %283 = vperm.xlu0 %282, %v197
        %v284 = vpop.permute.xlu0 %283
        %vm285 = vcmp.eq.s32.totalorder %v275, %v272
        %vm286 = vcmp.eq.s32.totalorder %v278, %v272
        %vm287 = vcmp.eq.s32.totalorder %v281, %v272
        %vm288 = vcmp.eq.s32.totalorder %v284, %v272
        %290 = vset.pattern.permute.xlu0 0
        %291 = vperm.xlu0 %290, %v264
        %v292 = vpop.permute.xlu0 %291
        %295 = vset.pattern.permute.xlu0 0
        %296 = vperm.xlu0 %295, %v266
        %v297 = vpop.permute.xlu0 %296
        %300 = vset.pattern.permute.xlu0 0
        %301 = vperm.xlu0 %300, %v268
        %v302 = vpop.permute.xlu0 %301
        %305 = vset.pattern.permute.xlu0 0
        %306 = vperm.xlu0 %305, %v270
        %v307 = vpop.permute.xlu0 %306
        %v309 = vsel %vm285, %v292, 0.0
        %v310 = vsel %vm286, %v297, 0.0
        %v311 = vsel %vm287, %v302, 0.0
        %v312 = vsel %vm288, %v307, 0.0
        %v313 = vadd.f32 %v309, 0.0
        %v314 = vadd.f32 %v310, 0.0
        %v315 = vadd.f32 %v311, 0.0
        %v316 = vadd.f32 %v312, 0.0
        %317 = vset.pattern.permute.xlu0 1
        %318 = vperm.xlu0 %317, %v194
        %v319 = vpop.permute.xlu0 %318
        %320 = vset.pattern.permute.xlu0 1
        %321 = vperm.xlu0 %320, %v195
        %v322 = vpop.permute.xlu0 %321
        %323 = vset.pattern.permute.xlu0 1
        %324 = vperm.xlu0 %323, %v196
        %v325 = vpop.permute.xlu0 %324
        %326 = vset.pattern.permute.xlu0 1
        %327 = vperm.xlu0 %326, %v197
        %v328 = vpop.permute.xlu0 %327
        %vm329 = vcmp.eq.s32.totalorder %v319, %v272
        %vm330 = vcmp.eq.s32.totalorder %v322, %v272
        %vm331 = vcmp.eq.s32.totalorder %v325, %v272
        %vm332 = vcmp.eq.s32.totalorder %v328, %v272
        %333 = vset.pattern.permute.xlu0 1
        %334 = vperm.xlu0 %333, %v264
        %v335 = vpop.permute.xlu0 %334
        %337 = vset.pattern.permute.xlu0 1
        %338 = vperm.xlu0 %337, %v266
        %v339 = vpop.permute.xlu0 %338
        %341 = vset.pattern.permute.xlu0 1
        %342 = vperm.xlu0 %341, %v268
        %v343 = vpop.permute.xlu0 %342
        %345 = vset.pattern.permute.xlu0 1
        %346 = vperm.xlu0 %345, %v270
        %v347 = vpop.permute.xlu0 %346
        %v349 = vsel %vm329, %v335, 0.0
        %v350 = vsel %vm330, %v339, 0.0
        %v351 = vsel %vm331, %v343, 0.0
        %v352 = vsel %vm332, %v347, 0.0
        %v353 = vadd.f32 %v313, %v349
        %v354 = vadd.f32 %v314, %v350
        %v355 = vadd.f32 %v315, %v351
        %v356 = vadd.f32 %v316, %v352
        %357 = vset.pattern.permute.xlu0 2
        %358 = vperm.xlu0 %357, %v194
        %v359 = vpop.permute.xlu0 %358
        %360 = vset.pattern.permute.xlu0 2
        %361 = vperm.xlu0 %360, %v195
        %v362 = vpop.permute.xlu0 %361
        %363 = vset.pattern.permute.xlu0 2
        %364 = vperm.xlu0 %363, %v196
        %v365 = vpop.permute.xlu0 %364
        %366 = vset.pattern.permute.xlu0 2
        %367 = vperm.xlu0 %366, %v197
        %v368 = vpop.permute.xlu0 %367
        %vm369 = vcmp.eq.s32.totalorder %v359, %v272
        %vm370 = vcmp.eq.s32.totalorder %v362, %v272
        %vm371 = vcmp.eq.s32.totalorder %v365, %v272
        %vm372 = vcmp.eq.s32.totalorder %v368, %v272
        %373 = vset.pattern.permute.xlu0 2
        %374 = vperm.xlu0 %373, %v264
        %v375 = vpop.permute.xlu0 %374
        %377 = vset.pattern.permute.xlu0 2
        %378 = vperm.xlu0 %377, %v266
        %v379 = vpop.permute.xlu0 %378
        %381 = vset.pattern.permute.xlu0 2
        %382 = vperm.xlu0 %381, %v268
        %v383 = vpop.permute.xlu0 %382
        %385 = vset.pattern.permute.xlu0 2
        %386 = vperm.xlu0 %385, %v270
        %v387 = vpop.permute.xlu0 %386
        %v389 = vsel %vm369, %v375, 0.0
        %v390 = vsel %vm370, %v379, 0.0
        %v391 = vsel %vm371, %v383, 0.0
        %v392 = vsel %vm372, %v387, 0.0
        %v393 = vadd.f32 %v353, %v389
        %v394 = vadd.f32 %v354, %v390
        %v395 = vadd.f32 %v355, %v391
        %v396 = vadd.f32 %v356, %v392
        %397 = vset.pattern.permute.xlu0 3
        %398 = vperm.xlu0 %397, %v194
        %v399 = vpop.permute.xlu0 %398
        %400 = vset.pattern.permute.xlu0 3
        %401 = vperm.xlu0 %400, %v195
        %v402 = vpop.permute.xlu0 %401
        %403 = vset.pattern.permute.xlu0 3
        %404 = vperm.xlu0 %403, %v196
        %v405 = vpop.permute.xlu0 %404
        %406 = vset.pattern.permute.xlu0 3
        %407 = vperm.xlu0 %406, %v197
        %v408 = vpop.permute.xlu0 %407
        %vm409 = vcmp.eq.s32.totalorder %v399, %v272
        %vm410 = vcmp.eq.s32.totalorder %v402, %v272
        %vm411 = vcmp.eq.s32.totalorder %v405, %v272
        %vm412 = vcmp.eq.s32.totalorder %v408, %v272
        %413 = vset.pattern.permute.xlu0 3
        %414 = vperm.xlu0 %413, %v264
        %v415 = vpop.permute.xlu0 %414
        %417 = vset.pattern.permute.xlu0 3
        %418 = vperm.xlu0 %417, %v266
        %v419 = vpop.permute.xlu0 %418
        %421 = vset.pattern.permute.xlu0 3
        %422 = vperm.xlu0 %421, %v268
        %v423 = vpop.permute.xlu0 %422
        %425 = vset.pattern.permute.xlu0 3
        %426 = vperm.xlu0 %425, %v270
        %v427 = vpop.permute.xlu0 %426
        %v429 = vsel %vm409, %v415, 0.0
        %v430 = vsel %vm410, %v419, 0.0
        %v431 = vsel %vm411, %v423, 0.0
        %v432 = vsel %vm412, %v427, 0.0
        %v433 = vadd.f32 %v393, %v429
        %v434 = vadd.f32 %v394, %v430
        %v435 = vadd.f32 %v395, %v431
        %v436 = vadd.f32 %v396, %v432
        %437 = vset.pattern.permute.xlu0 4
        %438 = vperm.xlu0 %437, %v194
        %v439 = vpop.permute.xlu0 %438
        %440 = vset.pattern.permute.xlu0 4
        %441 = vperm.xlu0 %440, %v195
        %v442 = vpop.permute.xlu0 %441
        %443 = vset.pattern.permute.xlu0 4
        %444 = vperm.xlu0 %443, %v196
        %v445 = vpop.permute.xlu0 %444
        %446 = vset.pattern.permute.xlu0 4
        %447 = vperm.xlu0 %446, %v197
        %v448 = vpop.permute.xlu0 %447
        %vm449 = vcmp.eq.s32.totalorder %v439, %v272
        %vm450 = vcmp.eq.s32.totalorder %v442, %v272
        %vm451 = vcmp.eq.s32.totalorder %v445, %v272
        %vm452 = vcmp.eq.s32.totalorder %v448, %v272
        %453 = vset.pattern.permute.xlu0 4
        %454 = vperm.xlu0 %453, %v264
        %v455 = vpop.permute.xlu0 %454
        %457 = vset.pattern.permute.xlu0 4
        %458 = vperm.xlu0 %457, %v266
        %v459 = vpop.permute.xlu0 %458
        %461 = vset.pattern.permute.xlu0 4
        %462 = vperm.xlu0 %461, %v268
        %v463 = vpop.permute.xlu0 %462
        %465 = vset.pattern.permute.xlu0 4
        %466 = vperm.xlu0 %465, %v270
        %v467 = vpop.permute.xlu0 %466
        %v469 = vsel %vm449, %v455, 0.0
        %v470 = vsel %vm450, %v459, 0.0
        %v471 = vsel %vm451, %v463, 0.0
        %v472 = vsel %vm452, %v467, 0.0
        %v473 = vadd.f32 %v433, %v469
        %v474 = vadd.f32 %v434, %v470
        %v475 = vadd.f32 %v435, %v471
        %v476 = vadd.f32 %v436, %v472
        %477 = vset.pattern.permute.xlu0 5
        %478 = vperm.xlu0 %477, %v194
        %v479 = vpop.permute.xlu0 %478
        %480 = vset.pattern.permute.xlu0 5
        %481 = vperm.xlu0 %480, %v195
        %v482 = vpop.permute.xlu0 %481
        %483 = vset.pattern.permute.xlu0 5
        %484 = vperm.xlu0 %483, %v196
        %v485 = vpop.permute.xlu0 %484
        %486 = vset.pattern.permute.xlu0 5
        %487 = vperm.xlu0 %486, %v197
        %v488 = vpop.permute.xlu0 %487
        %vm489 = vcmp.eq.s32.totalorder %v479, %v272
        %vm490 = vcmp.eq.s32.totalorder %v482, %v272
        %vm491 = vcmp.eq.s32.totalorder %v485, %v272
        %vm492 = vcmp.eq.s32.totalorder %v488, %v272
        %493 = vset.pattern.permute.xlu0 5
        %494 = vperm.xlu0 %493, %v264
        %v495 = vpop.permute.xlu0 %494
        %497 = vset.pattern.permute.xlu0 5
        %498 = vperm.xlu0 %497, %v266
        %v499 = vpop.permute.xlu0 %498
        %501 = vset.pattern.permute.xlu0 5
        %502 = vperm.xlu0 %501, %v268
        %v503 = vpop.permute.xlu0 %502
        %505 = vset.pattern.permute.xlu0 5
        %506 = vperm.xlu0 %505, %v270
        %v507 = vpop.permute.xlu0 %506
        %v509 = vsel %vm489, %v495, 0.0
        %v510 = vsel %vm490, %v499, 0.0
        %v511 = vsel %vm491, %v503, 0.0
        %v512 = vsel %vm492, %v507, 0.0
        %v513 = vadd.f32 %v473, %v509
        %v514 = vadd.f32 %v474, %v510
        %v515 = vadd.f32 %v475, %v511
        %v516 = vadd.f32 %v476, %v512
        %517 = vset.pattern.permute.xlu0 6
        %518 = vperm.xlu0 %517, %v194
        %v519 = vpop.permute.xlu0 %518
        %520 = vset.pattern.permute.xlu0 6
        %521 = vperm.xlu0 %520, %v195
        %v522 = vpop.permute.xlu0 %521
        %523 = vset.pattern.permute.xlu0 6
        %524 = vperm.xlu0 %523, %v196
        %v525 = vpop.permute.xlu0 %524
        %526 = vset.pattern.permute.xlu0 6
        %527 = vperm.xlu0 %526, %v197
        %v528 = vpop.permute.xlu0 %527
        %vm529 = vcmp.eq.s32.totalorder %v519, %v272
        %vm530 = vcmp.eq.s32.totalorder %v522, %v272
        %vm531 = vcmp.eq.s32.totalorder %v525, %v272
        %vm532 = vcmp.eq.s32.totalorder %v528, %v272
        %533 = vset.pattern.permute.xlu0 6
        %534 = vperm.xlu0 %533, %v264
        %v535 = vpop.permute.xlu0 %534
        %537 = vset.pattern.permute.xlu0 6
        %538 = vperm.xlu0 %537, %v266
        %v539 = vpop.permute.xlu0 %538
        %541 = vset.pattern.permute.xlu0 6
        %542 = vperm.xlu0 %541, %v268
        %v543 = vpop.permute.xlu0 %542
        %545 = vset.pattern.permute.xlu0 6
        %546 = vperm.xlu0 %545, %v270
        %v547 = vpop.permute.xlu0 %546
        %v549 = vsel %vm529, %v535, 0.0
        %v550 = vsel %vm530, %v539, 0.0
        %v551 = vsel %vm531, %v543, 0.0
        %v552 = vsel %vm532, %v547, 0.0
        %v553 = vadd.f32 %v513, %v549
        %v554 = vadd.f32 %v514, %v550
        %v555 = vadd.f32 %v515, %v551
        %v556 = vadd.f32 %v516, %v552
        %557 = vset.pattern.permute.xlu0 7
        %558 = vperm.xlu0 %557, %v194
        %v559 = vpop.permute.xlu0 %558
        %560 = vset.pattern.permute.xlu0 7
        %561 = vperm.xlu0 %560, %v195
        %v562 = vpop.permute.xlu0 %561
        %563 = vset.pattern.permute.xlu0 7
        %564 = vperm.xlu0 %563, %v196
        %v565 = vpop.permute.xlu0 %564
        %566 = vset.pattern.permute.xlu0 7
        %567 = vperm.xlu0 %566, %v197
        %v568 = vpop.permute.xlu0 %567
        %vm569 = vcmp.eq.s32.totalorder %v559, %v272
        %vm570 = vcmp.eq.s32.totalorder %v562, %v272
        %vm571 = vcmp.eq.s32.totalorder %v565, %v272
        %vm572 = vcmp.eq.s32.totalorder %v568, %v272
        %573 = vset.pattern.permute.xlu0 7
        %574 = vperm.xlu0 %573, %v264
        %v575 = vpop.permute.xlu0 %574
        %577 = vset.pattern.permute.xlu0 7
        %578 = vperm.xlu0 %577, %v266
        %v579 = vpop.permute.xlu0 %578
        %581 = vset.pattern.permute.xlu0 7
        %582 = vperm.xlu0 %581, %v268
        %v583 = vpop.permute.xlu0 %582
        %585 = vset.pattern.permute.xlu0 7
        %586 = vperm.xlu0 %585, %v270
        %v587 = vpop.permute.xlu0 %586
        %v589 = vsel %vm569, %v575, 0.0
        %v590 = vsel %vm570, %v579, 0.0
        %v591 = vsel %vm571, %v583, 0.0
        %v592 = vsel %vm572, %v587, 0.0
        %v593 = vadd.f32 %v553, %v589
        %v594 = vadd.f32 %v554, %v590
        %v595 = vadd.f32 %v555, %v591
        %v596 = vadd.f32 %v556, %v592
        %v597 = vld [vmem:[%s0] sm:$0xff]
        %v598 = vld [vmem:[%s0 + $0x8] sm:$0xff]
        %v599 = vld [vmem:[%s0 + $0x10] sm:$0xff]
        %v600 = vld [vmem:[%s0 + $0x18] sm:$0xff]
        %v601 = vld [vmem:[%s0 + $0x20] sm:$0xff]
        %v602 = vld [vmem:[%s0 + $0x28] sm:$0xff]
        %v603 = vld [vmem:[%s0 + $0x30] sm:$0xff]
        %v604 = vld [vmem:[%s0 + $0x38] sm:$0xff]
        %v605 = vld [vmem:[%s0 + $0x40] sm:$0xff]
        %v606 = vld [vmem:[%s0 + $0x48] sm:$0xff]
        %v607 = vld [vmem:[%s0 + $0x50] sm:$0xff]
        %v608 = vld [vmem:[%s0 + $0x58] sm:$0xff]
        %v609 = vld [vmem:[%s0 + $0x60] sm:$0xff]
        %v610 = vld [vmem:[%s0 + $0x68] sm:$0xff]
        %v611 = vld [vmem:[%s0 + $0x70] sm:$0xff]
        %v612 = vld [vmem:[%s0 + $0x78] sm:$0xff]
        %613 = vmatprep.subr.mxu0 0.0
        %614 = vmatpush1.msra.mxu0 %v597
        %615 = vmatprep.subr.mxu0 0.0
        %616 = vmatpush1.msra.mxu0 %v598
        %617 = vmatprep.subr.mxu0 0.0
        %618 = vmatpush1.msra.mxu0 %v599
        %619 = vmatprep.subr.mxu0 0.0
        %620 = vmatpush1.msra.mxu0 %v600
        %621 = vmatprep.subr.mxu0 0.0
        %622 = vmatpush1.msra.mxu0 %v601
        %623 = vmatprep.subr.mxu0 0.0
        %624 = vmatpush1.msra.mxu0 %v602
        %625 = vmatprep.subr.mxu0 0.0
        %626 = vmatpush1.msra.mxu0 %v603
        %627 = vmatprep.subr.mxu0 0.0
        %628 = vmatpush1.msra.mxu0 %v604
        %629 = vmatprep.subr.mxu0 0.0
        %630 = vmatpush1.msra.mxu0 %v605
        %631 = vmatprep.subr.mxu0 0.0
        %632 = vmatpush1.msra.mxu0 %v606
        %633 = vmatprep.subr.mxu0 0.0
        %634 = vmatpush1.msra.mxu0 %v607
        %635 = vmatprep.subr.mxu0 0.0
        %636 = vmatpush1.msra.mxu0 %v608
        %637 = vmatprep.subr.mxu0 0.0
        %638 = vmatpush1.msra.mxu0 %v609
        %639 = vmatprep.subr.mxu0 0.0
        %640 = vmatpush1.msra.mxu0 %v610
        %641 = vmatprep.subr.mxu0 0.0
        %642 = vmatpush1.msra.mxu0 %v611
        %643 = vmatprep.subr.mxu0 0.0
        %644 = vmatpush1.msra.mxu0 %v612
        %645 = vmatprep.subr.mxu0 0.0
        %646 = vmatpush1.msra.mxu0 0.0
        %647 = vmatprep.subr.mxu0 0.0
        %648 = vmatpush1.msra.mxu0 0.0
        %649 = vmatprep.subr.mxu0 0.0
        %650 = vmatpush1.msra.mxu0 0.0
        %651 = vmatprep.subr.mxu0 0.0
        %652 = vmatpush1.msra.mxu0 0.0
        %653 = vmatprep.subr.mxu0 0.0
        %654 = vmatpush1.msra.mxu0 0.0
        %655 = vmatprep.subr.mxu0 0.0
        %656 = vmatpush1.msra.mxu0 0.0
        %657 = vmatprep.subr.mxu0 0.0
        %658 = vmatpush1.msra.mxu0 0.0
        %659 = vmatprep.subr.mxu0 0.0
        %660 = vmatpush1.msra.mxu0 0.0
        %661 = vmatprep.subr.mxu0 0.0
        %662 = vmatpush1.msra.mxu0 0.0
        %663 = vmatprep.subr.mxu0 0.0
        %664 = vmatpush1.msra.mxu0 0.0
        %665 = vmatprep.subr.mxu0 0.0
        %666 = vmatpush1.msra.mxu0 0.0
        %667 = vmatprep.subr.mxu0 0.0
        %668 = vmatpush1.msra.mxu0 0.0
        %669 = vmatprep.subr.mxu0 0.0
        %670 = vmatpush1.msra.mxu0 0.0
        %671 = vmatprep.subr.mxu0 0.0
        %672 = vmatpush1.msra.mxu0 0.0
        %673 = vmatprep.subr.mxu0 0.0
        %674 = vmatpush1.msra.mxu0 0.0
        %675 = vmatprep.subr.mxu0 0.0
        %676 = vmatpush1.msra.mxu0 0.0
        %677 = vmatprep.mubr.f32.mxu0 0.0
        %678 = vmatmul.mubr.f32.gmra.mrb[0].mxu0 %v593
        %v679 = vpop.f32.mrb[0].mxu0
        %v680 = vadd.f32 0.0, %v679
        %v681 = vpop.f32.mrb[0].mxu0
        %682 = vmatprep.mubr.f32.mxu0 0.0
        %683 = vmatmul.mubr.f32.gmra.mrb[0].mxu0 %v594
        %v684 = vpop.f32.mrb[0].mxu0
        %v685 = vadd.f32 0.0, %v684
        %v686 = vpop.f32.mrb[0].mxu0
        %687 = vmatprep.mubr.f32.mxu0 0.0
        %688 = vmatmul.mubr.f32.gmra.mrb[0].mxu0 %v595
        %v689 = vpop.f32.mrb[0].mxu0
        %v690 = vadd.f32 0.0, %v689
        %v691 = vpop.f32.mrb[0].mxu0
        %692 = vmatprep.mubr.f32.mxu0 0.0
        %693 = vmatmul.mubr.f32.gmra.mrb[0].mxu0 %v596
        %v694 = vpop.f32.mrb[0].mxu0
        %v695 = vadd.f32 0.0, %v694
        %v696 = vpop.f32.mrb[0].mxu0
        %697 = vdwg.mxu0
        %698 = vst [vmem:[%s180] sm:$0xff] %v680
        %699 = vst [vmem:[%s180 + $0x8] sm:$0xff] %v685
        %700 = vst [vmem:[%s180 + $0x10] sm:$0xff] %v690
        %701 = vst [vmem:[%s180 + $0x18] sm:$0xff] %v695
        %s702 = sand.u32 %s98, 1
        %s703 = scalar_lea.sflag [#allocation3], %s702
        %s704 = sand.u32 %s98, 1
        %s705 = smul.addr %s704, 32
        %s706 = scalar_lea.vmem [#allocation2], %s705
        // Predicated region
        $region33: #{tpu_custom_call.1} parent=31 // pred_check
          %p707 = pneg %p108
        $region34: #{tpu_custom_call.1} parent=31 // pred_check_branch
          %709 = sbr.rel (%p707) target = $region36
        $region35: #{tpu_custom_call.1} parent=31 // pred_region
          %s710 = smul.u32 4, %s17
          %s712 = ssub.s32 512, 512
          %713 = vsyncadd %s703, %s712
          %s714 = smul.addr %s710, 128
          %s715 = scalar_lea.hbm %s3, %s714
          %s716 = sshll.u32 %s706, 4
          %s717 = int_to_ptr.vmem [resolvable:$true] %s716
          %722 = dma.vmem_to_hbm [thread:$0]  %s717, 512, %s715, %s703, 128, 128, 8
        $region36: #{tpu_custom_call.1} parent=31 // pred_fallthru
          _
      $region32: #{tpu_custom_call.1} parent=5 // pred_fallthru
        _
      %p723 = scmp.le.s32.totalorder 2, %s12
      // Predicated region
      $region37: #{tpu_custom_call.1} parent=5 // pred_check
        %p724 = pneg %p723
      $region38: #{tpu_custom_call.1} parent=5 // pred_check_branch
        %726 = sbr.rel (%p724) target = $region40
      $region39: #{tpu_custom_call.1} parent=5 // pred_region
        %s727 = ssub.s32 %s12, 2
        // Predicated region
        $region41: #{tpu_custom_call.1} parent=39 // pred_check
          %p728 = pneg %p114
        $region42: #{tpu_custom_call.1} parent=39 // pred_check_branch
          %730 = sbr.rel (%p728) target = $region44
        $region43: #{tpu_custom_call.1} parent=39 // pred_region
          %s731 = sand.u32 %s99, 1
          %s732 = scalar_lea.sflag [#allocation3], %s731
          %s733 = sand.u32 %s99, 1
          %s734 = smul.addr %s733, 32
          %s735 = scalar_lea.vmem [#allocation2], %s734
          %736 = dma.done %s732, 512
        $region44: #{tpu_custom_call.1} parent=39 // pred_fallthru
          _
      $region40: #{tpu_custom_call.1} parent=5 // pred_fallthru
        _
    $region6: #{tpu_custom_call.1} parent=1 // loop_footer
      %s16 = sadd.s32 1, %s12
    $region7: #{tpu_custom_call.1} parent=1 // loop_footer_branch
      %11 = sbr.rel target = $region3
    $region8: #{tpu_custom_call.1} parent=1 // loop_exit
      _
    %737 = vsyncpa [#allocation3], 1
    %s738 = scalar_lea.sflag [#allocation3], 1
    %739 = vsyncpa %s738, 1

</llo_original>
